<compile_context>
chip_gen: v7x
topology: tpu7x:2x2x1
jax: 0.10.0
libtpu: 0.0.40
codegen_flags: <defaults>
</compile_context>

<pallas_src>
import jax
import jax.numpy as jnp
from jax import lax
from jax.experimental import pallas as pl
from jax.experimental.pallas import tpu as pltpu


# ---------------------------------------------------------------------------
# Kernel body: one (batch, row-tile) grid step.
# ---------------------------------------------------------------------------
def _conv3x3_prelu_kernel(x_ref, w_ref, b_ref, alpha_ref, o_ref):
    """3x3 conv (input already zero-padded) + bias + shared-alpha PReLU.

    x_ref:     (TH+2, W+2, Cin)  halo'd input row window (VMEM)
    w_ref:     (3, 3*Cin, Cout)  per-kernel-row im2col weights, row idx = dw*Cin + c
    b_ref:     (1, Cout)         bias, float32 (VMEM)
    alpha_ref: (1,)              shared PReLU alpha (SMEM scalar)
    o_ref:     (TH*W, Cout)      flattened output slab (VMEM), input dtype
    """
    th2, w2, cin = x_ref.shape
    th, wd = th2 - 2, w2 - 2
    mxu_dtype = w_ref.dtype

    acc = None
    for dh in range(3):                              # static 3-step unroll
        row = x_ref[dh:dh + th]                      # (TH, W+2, Cin) outer-dim slice
        # dw taps of this kernel row concatenated along channels -> K = 3*Cin.
        # TODO(synk): dw=1,2 slices are sublane-misaligned (relayout copies); switch
        # to pltpu.roll along axis=1 once validated for odd W / small-Cin shapes.
        taps = [row[:, dw:dw + wd, :] for dw in range(3)]
        patch = jnp.concatenate(taps, axis=-1).reshape(th * wd, 3 * cin)
        contrib = jnp.dot(patch.astype(mxu_dtype), w_ref[dh],
                          preferred_element_type=jnp.float32)
        acc = contrib if acc is None else acc + contrib

    acc = acc + b_ref[...]                           # (1, Cout) f32 broadcast
    # PReLU with a single shared alpha; applying it before the pixel shuffle is
    # valid only because nn.PReLU() has exactly one parameter (asserted in wrapper).
    alpha = alpha_ref[0].astype(jnp.float32)
    y = jnp.where(acc >= 0, acc, alpha * acc)
    o_ref[...] = y.astype(o_ref.dtype)


# ---------------------------------------------------------------------------
# VMEM / tiling heuristics (generation aware).
# ---------------------------------------------------------------------------
def _physical_vmem_bytes():
    """Physical VMEM of the local TPU generation (fallback: 64 MiB, the v7x minimum)."""
    try:
        cap = getattr(pltpu.get_tpu_info(), "vmem_capacity_bytes", None)
        if cap:
            return int(cap)
    except Exception:
        pass
    return 64 * 1024 * 1024


def _step_vmem_bytes(th, W, Cin, Cout, in_itemsize, mxu_itemsize):
    """Per-grid-step VMEM: double-buffered pipeline blocks + in-kernel im2col patch
    (K=3*Cin slab, counted twice for the pre/post-cast copies) + f32 accumulator."""
    inp = (th + 2) * (W + 2) * Cin * in_itemsize
    out = th * W * Cout * in_itemsize
    wgt = 9 * Cin * Cout * mxu_itemsize + Cout * 4
    patch = th * W * 3 * Cin * max(in_itemsize, mxu_itemsize)
    acc = th * W * Cout * 4
    return 2 * (inp + out + wgt) + 2 * patch + acc


def _pick_row_tile(N, H, W, Cin, Cout, in_itemsize, mxu_itemsize, tile_budget):
    """Largest divisor-of-H row tile fitting the budget; prefers >=2 (ideally even)
    total grid steps (v7x megacore) and TH*W multiples of 256/128 (MXU-friendly)."""
    def fp(d):
        return _step_vmem_bytes(d, W, Cin, Cout, in_itemsize, mxu_itemsize)

    divisors = [d for d in range(1, H + 1)
                if H % d == 0 and ((d * W) % 8 == 0 or d == H)]
    fitting = [d for d in divisors if fp(d) <= tile_budget] or [min(divisors)]

    # Keep both v7x TensorCores busy: prefer a grid of >= 2 steps when possible.
    pool = [d for d in fitting if N * (H // d) >= 2] or fitting

    def align_rank(d):
        m = d * W
        return 3 if m % 256 == 0 else 2 if m % 128 == 0 else 1 if m % 8 == 0 else 0

    best = max(align_rank(d) for d in pool)
    pool = [d for d in pool if align_rank(d) == best]
    even = [d for d in pool if (N * (H // d)) % 2 == 0]
    return max(even or pool)


# ---------------------------------------------------------------------------
# Capability probe: overlapping pl.Element row windows (zero-copy halo).
# ---------------------------------------------------------------------------
_HALO_MODE = None   # "element" (zero-copy windows) or "stack" (materialized tiles)


def _probe_element_windows():
    """Tiny eager pallas_call checking that pl.Element row windows are supported AND
    use element-offset (not block-index) semantics."""
    rows, sub, lanes, step, win = 10, 8, 128, 4, 6
    x = jnp.arange(rows * sub * lanes, dtype=jnp.float32).reshape(rows, sub, lanes)

    def copy_kernel(x_ref, o_ref):
        o_ref[...] = x_ref[...]

    out = pl.pallas_call(
        copy_kernel,
        out_shape=jax.ShapeDtypeStruct((2, win, sub, lanes), jnp.float32),
        grid=(2,),
        in_specs=[pl.BlockSpec((pl.Element(win), sub, lanes),
                               lambda i: (i * step, 0, 0))],
        out_specs=pl.BlockSpec((pl.Squeezed(), win, sub, lanes),
                               lambda i: (i, 0, 0, 0)),
    )(x)
    out = jax.block_until_ready(out)
    expected = jnp.stack([x[0:win], x[step:step + win]])
    if not bool(jnp.allclose(out, expected)):
        raise RuntimeError("pl.Element window semantics mismatch")


def _halo_mode():
    global _HALO_MODE
    if _HALO_MODE is None:
        try:
            _probe_element_windows()
            _HALO_MODE = "element"
        except Exception:
            _HALO_MODE = "stack"
    return _HALO_MODE


# ---------------------------------------------------------------------------
# pallas_call wrapper: fused conv3x3(pad=1) + bias + PReLU, NHWC input.
# ---------------------------------------------------------------------------
def conv3x3_prelu_pallas(x_nhwc, w3, bias_f32, alpha1, *, halo_mode="element"):
    """x_nhwc: (N,H,W,Cin); w3: (3, 3*Cin, Cout); bias_f32: (Cout,) f32; alpha1: (1,) f32.
    Returns (N, H*W, Cout) in x_nhwc.dtype (caller applies the pixel shuffle)."""
    N, H, W, Cin = x_nhwc.shape
    _, K3, Cout = w3.shape
    assert K3 == 3 * Cin

    physical = _physical_vmem_bytes()
    scoped_cap = int(physical * 0.75)        # never request all of physical VMEM
    tile_budget = int(scoped_cap * 0.4)      # per-step footprint target

    th = _pick_row_tile(N, H, W, Cin, Cout, x_nhwc.dtype.itemsize,
                        w3.dtype.itemsize, tile_budget)
    nt = H // th

    # Single spatial zero-pad (one HBM pass).  The overlapping halo'd row windows
    # are carved out by the input BlockSpec below (no materialized halo copies).
    xp = jnp.pad(x_nhwc, ((0, 0), (1, 1), (1, 1), (0, 0)))

    step_bytes = _step_vmem_bytes(th, W, Cin, Cout, x_nhwc.dtype.itemsize,
                                  w3.dtype.itemsize)
    vmem_limit = (None if step_bytes <= 12 * 1024 * 1024
                  else min(scoped_cap, max(32 * 1024 * 1024, int(1.5 * step_bytes))))

    b2 = bias_f32.reshape(1, Cout)
    a1 = jnp.asarray(alpha1, jnp.float32).reshape(1)

    if halo_mode == "element":
        # Zero-copy overlapping windows: grid step (n, i) reads padded rows
        # [i*TH, i*TH + TH + 2) straight from the padded input.
        x_in = xp
        x_spec = pl.BlockSpec((pl.Squeezed(), pl.Element(th + 2), W + 2, Cin),
                              lambda n, i: (n, i * th, 0, 0))
    else:
        # Fallback only: materialize the halo'd row tiles (extra input HBM pass).
        x_in = jnp.stack([xp[:, i * th:i * th + th + 2] for i in range(nt)], axis=1)
        x_spec = pl.BlockSpec((pl.Squeezed(), pl.Squeezed(), th + 2, W + 2, Cin),
                              lambda n, i: (n, i, 0, 0, 0))

    # TODO(synk): single-buffer the constant weight/bias blocks with
    # pipeline_mode=pl.Buffered(1) once verified on the target toolchain.
    grid_spec = pltpu.PrefetchScalarGridSpec(
        num_scalar_prefetch=0,
        grid=(N, nt),
        in_specs=[
            x_spec,
            pl.BlockSpec((3, 3 * Cin, Cout), lambda n, i: (0, 0, 0)),
            pl.BlockSpec((1, Cout), lambda n, i: (0, 0)),
            pl.BlockSpec(memory_space=pltpu.MemorySpace.SMEM),   # alpha scalar
        ],
        out_specs=pl.BlockSpec((pl.Squeezed(), th * W, Cout),
                               lambda n, i: (n, i, 0)),
    )

    return pl.pallas_call(
        _conv3x3_prelu_kernel,
        out_shape=jax.ShapeDtypeStruct((N, H * W, Cout), x_nhwc.dtype),
        grid_spec=grid_spec,
        compiler_params=pltpu.CompilerParams(
            dimension_semantics=("parallel", "parallel"),
            vmem_limit_bytes=vmem_limit),
    )(x_in, w3, b2, a1)


# ---------------------------------------------------------------------------
# UpsampleBLock forward.
# ---------------------------------------------------------------------------
def _forward_impl(x_nchw, conv_w, conv_b, prelu_alpha, up_scale, use_bf16_mxu,
                  halo_mode):
    N, Cin, H, W = x_nchw.shape
    Cout = conv_w.shape[0]
    r = up_scale
    assert Cout == Cin * r * r, "conv must expand channels by up_scale**2"

    alpha = jnp.asarray(prelu_alpha, jnp.float32).reshape(-1)
    if alpha.shape[0] != 1:
        raise ValueError("Only single shared-alpha nn.PReLU() is supported "
                         "(PReLU is fused before the pixel shuffle).")

    # bf16 MXU operands by default (f32 accumulation); exact-f32 escape hatch.
    mxu_dtype = (jnp.bfloat16 if (use_bf16_mxu or x_nchw.dtype == jnp.bfloat16)
                 else x_nchw.dtype)

    # NCHW -> NHWC (channels on lanes).
    x_nhwc = jnp.transpose(x_nchw, (0, 2, 3, 1))
    # (Cout, Cin, kh, kw) -> (kh, kw, Cin, Cout) -> (3, 3*Cin, Cout): w3[dh, dw*Cin+c, o]
    w3 = jnp.transpose(conv_w, (2, 3, 1, 0)).reshape(3, 3 * Cin, Cout).astype(mxu_dtype)

    y = conv3x3_prelu_pallas(x_nhwc, w3, conv_b.astype(jnp.float32), alpha,
                             halo_mode=halo_mode)            # (N, H*W, Cout)

    # PixelShuffle + NHWC->NCHW fused into ONE 6-D transpose:
    #   y[n, h, w, c*r*r + i*r + j] -> out[n, c, h*r + i, w*r + j]
    y = y.reshape(N, H, W, Cin, r, r)
    y = jnp.transpose(y, (0, 3, 1, 4, 2, 5))                 # (N, Cin, H, r, W, r)
    return y.reshape(N, Cin, H * r, W * r)


_forward_jit = jax.jit(_forward_impl, static_argnums=(4, 5, 6))


def upsample_block_forward(x_nchw, conv_w, conv_b, prelu_alpha, up_scale,
                           use_bf16_mxu=True):
    """UpsampleBLock forward: Conv2d(3x3, pad=1) -> PixelShuffle(r) -> PReLU."""
    return _forward_jit(x_nchw, conv_w, conv_b, prelu_alpha, up_scale,
                        bool(use_bf16_mxu), _halo_mode())


# ---------------------------------------------------------------------------
# Pure-JAX reference (lax conv) for correctness checking.
# ---------------------------------------------------------------------------
def _reference_forward(x_nchw, conv_w, conv_b, prelu_alpha, up_scale):
    y = lax.conv_general_dilated(
        x_nchw.astype(jnp.float32), conv_w.astype(jnp.float32),
        window_strides=(1, 1), padding=((1, 1), (1, 1)),
        dimension_numbers=("NCHW", "OIHW", "NCHW"))
    y = y + conv_b.reshape(1, -1, 1, 1).astype(jnp.float32)
    N, Crr, H, W = y.shape
    r = up_scale
    C = Crr // (r * r)
    y = y.reshape(N, C, r, r, H, W).transpose(0, 1, 4, 2, 5, 3)
    y = y.reshape(N, C, H * r, W * r)
    return jnp.where(y >= 0, y, prelu_alpha * y)


if __name__ == "__main__":
    # Small deterministic setup consistent with the module:
    # in_channels=4, up_scale=2 -> conv: 4 -> 16 channels, kernel 3x3 pad 1.
    N, Cin, H, W = 2, 4, 16, 16
    up_scale = 2
    Cout = Cin * up_scale ** 2

    key = jax.random.PRNGKey(0)
    kx, kw, kb = jax.random.split(key, 3)
    x = jax.random.normal(kx, (N, Cin, H, W), dtype=jnp.float32)
    conv_w = 0.1 * jax.random.normal(kw, (Cout, Cin, 3, 3), dtype=jnp.float32)
    conv_b = 0.1 * jax.random.normal(kb, (Cout,), dtype=jnp.float32)
    prelu_alpha = jnp.float32(0.25)  # PyTorch nn.PReLU() default init

    # Default fast path: bf16 MXU operands, f32 accumulation.
    out = upsample_block_forward(x, conv_w, conv_b, prelu_alpha, up_scale)
    out = jax.block_until_ready(out)

    # Exact-f32 path (same kernel structure, f32 MXU operands).
    out_f32 = upsample_block_forward(x, conv_w, conv_b, prelu_alpha, up_scale,
                                     use_bf16_mxu=False)
    out_f32 = jax.block_until_ready(out_f32)

    ref = jax.block_until_ready(
        _reference_forward(x, conv_w, conv_b, prelu_alpha, up_scale))

    assert out.shape == (N, Cin, H * up_scale, W * up_scale), out.shape
    assert out.dtype == x.dtype, out.dtype
    assert jnp.allclose(out_f32, ref, atol=1e-4, rtol=1e-4), "f32 path mismatch"
    assert jnp.allclose(out, ref, atol=3e-2, rtol=3e-2), "bf16-MXU path mismatch"

    print("KERNEL_OK")
</pallas_src>

<mosaic_0001>
module attributes {stable_mosaic.version = 11 : i64} {
  func.func @_conv3x3_prelu_kernel(%arg0: i32, %arg1: i32, %arg2: memref<1x1x18x18x4xf32, #tpu.memory_space<vmem>>, %arg3: memref<3x12x16xbf16, #tpu.memory_space<vmem>>, %arg4: memref<1x16xf32, #tpu.memory_space<vmem>>, %arg5: memref<1xf32, #tpu.memory_space<smem>>, %arg6: memref<1x256x16xf32, #tpu.memory_space<vmem>>) attributes {dimension_semantics = [#tpu.dimension_semantics<parallel>, #tpu.dimension_semantics<parallel>], iteration_bounds = array<i64: 2, 1>, scalar_prefetch = 0 : i64, scratch_operands = 0 : i64, tpu.core_type = #tpu.core_type<tc>, window_params = [{transform_indices = @transform_0, window_bounds = array<i64: 1, 1, 18, 18, 4>}, {pipeline_mode = #tpu.pipeline_mode<synchronous>, transform_indices = @transform_1, window_bounds = array<i64: 3, 12, 16>}, {pipeline_mode = #tpu.pipeline_mode<synchronous>, transform_indices = @transform_2, window_bounds = array<i64: 1, 16>}, {transform_indices = @transform_3, window_bounds = array<i64: 1>}, {transform_indices = @transform_4, window_bounds = array<i64: 1, 256, 16>}]} {
    %c0 = arith.constant 0 : index
    %c0_0 = arith.constant 0 : index
    %c0_1 = arith.constant 0 : index
    %c0_2 = arith.constant 0 : index
    %c0_3 = arith.constant 0 : index
    %0 = vector.load %arg2[%c0, %c0_0, %c0_1, %c0_2, %c0_3] : memref<1x1x18x18x4xf32, #tpu.memory_space<vmem>>, vector<1x1x16x18x4xf32>
    %1 = vector.shape_cast %0 : vector<1x1x16x18x4xf32> to vector<16x18x4xf32>
    %2 = vector.extract_strided_slice %1 {offsets = [0, 0, 0], sizes = [16, 16, 4], strides = [1, 1, 1]} : vector<16x18x4xf32> to vector<16x16x4xf32>
    %3 = vector.extract_strided_slice %1 {offsets = [0, 1, 0], sizes = [16, 16, 4], strides = [1, 1, 1]} : vector<16x18x4xf32> to vector<16x16x4xf32>
    %4 = vector.extract_strided_slice %1 {offsets = [0, 2, 0], sizes = [16, 16, 4], strides = [1, 1, 1]} : vector<16x18x4xf32> to vector<16x16x4xf32>
    %5 = tpu.concatenate %2, %3, %4 in 2 : vector<16x16x4xf32>, vector<16x16x4xf32>, vector<16x16x4xf32> -> vector<16x16x12xf32>
    %6 = vector.shape_cast %5 : vector<16x16x12xf32> to vector<256x12xf32>
    %7 = arith.truncf %6 : vector<256x12xf32> to vector<256x12xbf16>
    %c0_4 = arith.constant 0 : index
    %c0_5 = arith.constant 0 : index
    %c0_6 = arith.constant 0 : index
    %8 = vector.load %arg3[%c0_4, %c0_5, %c0_6] : memref<3x12x16xbf16, #tpu.memory_space<vmem>>, vector<1x12x16xbf16>
    %9 = vector.shape_cast %8 : vector<1x12x16xbf16> to vector<12x16xbf16>
    %cst = arith.constant dense<0.000000e+00> : vector<256x16xf32>
    %10 = tpu.matmul %7, %9, %cst {dimension_numbers = #tpu.dot_dimension_numbers<[1], [0], [0], [1], [0, 0, 1, 1], [], []>} : vector<256x12xbf16>, vector<12x16xbf16>, vector<256x16xf32> -> vector<256x16xf32>
    %c0_7 = arith.constant 0 : index
    %c0_8 = arith.constant 0 : index
    %c1 = arith.constant 1 : index
    %c0_9 = arith.constant 0 : index
    %c0_10 = arith.constant 0 : index
    %11 = vector.load %arg2[%c0_7, %c0_8, %c1, %c0_9, %c0_10] : memref<1x1x18x18x4xf32, #tpu.memory_space<vmem>>, vector<1x1x16x18x4xf32>
    %12 = vector.shape_cast %11 : vector<1x1x16x18x4xf32> to vector<16x18x4xf32>
    %13 = vector.extract_strided_slice %12 {offsets = [0, 0, 0], sizes = [16, 16, 4], strides = [1, 1, 1]} : vector<16x18x4xf32> to vector<16x16x4xf32>
    %14 = vector.extract_strided_slice %12 {offsets = [0, 1, 0], sizes = [16, 16, 4], strides = [1, 1, 1]} : vector<16x18x4xf32> to vector<16x16x4xf32>
    %15 = vector.extract_strided_slice %12 {offsets = [0, 2, 0], sizes = [16, 16, 4], strides = [1, 1, 1]} : vector<16x18x4xf32> to vector<16x16x4xf32>
    %16 = tpu.concatenate %13, %14, %15 in 2 : vector<16x16x4xf32>, vector<16x16x4xf32>, vector<16x16x4xf32> -> vector<16x16x12xf32>
    %17 = vector.shape_cast %16 : vector<16x16x12xf32> to vector<256x12xf32>
    %18 = arith.truncf %17 : vector<256x12xf32> to vector<256x12xbf16>
    %c1_11 = arith.constant 1 : index
    %c0_12 = arith.constant 0 : index
    %c0_13 = arith.constant 0 : index
    %19 = vector.load %arg3[%c1_11, %c0_12, %c0_13] : memref<3x12x16xbf16, #tpu.memory_space<vmem>>, vector<1x12x16xbf16>
    %20 = vector.shape_cast %19 : vector<1x12x16xbf16> to vector<12x16xbf16>
    %cst_14 = arith.constant dense<0.000000e+00> : vector<256x16xf32>
    %21 = tpu.matmul %18, %20, %cst_14 {dimension_numbers = #tpu.dot_dimension_numbers<[1], [0], [0], [1], [0, 0, 1, 1], [], []>} : vector<256x12xbf16>, vector<12x16xbf16>, vector<256x16xf32> -> vector<256x16xf32>
    %22 = arith.addf %10, %21 : vector<256x16xf32>
    %c0_15 = arith.constant 0 : index
    %c0_16 = arith.constant 0 : index
    %c2 = arith.constant 2 : index
    %c0_17 = arith.constant 0 : index
    %c0_18 = arith.constant 0 : index
    %23 = vector.load %arg2[%c0_15, %c0_16, %c2, %c0_17, %c0_18] : memref<1x1x18x18x4xf32, #tpu.memory_space<vmem>>, vector<1x1x16x18x4xf32>
    %24 = vector.shape_cast %23 : vector<1x1x16x18x4xf32> to vector<16x18x4xf32>
    %25 = vector.extract_strided_slice %24 {offsets = [0, 0, 0], sizes = [16, 16, 4], strides = [1, 1, 1]} : vector<16x18x4xf32> to vector<16x16x4xf32>
    %26 = vector.extract_strided_slice %24 {offsets = [0, 1, 0], sizes = [16, 16, 4], strides = [1, 1, 1]} : vector<16x18x4xf32> to vector<16x16x4xf32>
    %27 = vector.extract_strided_slice %24 {offsets = [0, 2, 0], sizes = [16, 16, 4], strides = [1, 1, 1]} : vector<16x18x4xf32> to vector<16x16x4xf32>
    %28 = tpu.concatenate %25, %26, %27 in 2 : vector<16x16x4xf32>, vector<16x16x4xf32>, vector<16x16x4xf32> -> vector<16x16x12xf32>
    %29 = vector.shape_cast %28 : vector<16x16x12xf32> to vector<256x12xf32>
    %30 = arith.truncf %29 : vector<256x12xf32> to vector<256x12xbf16>
    %c2_19 = arith.constant 2 : index
    %c0_20 = arith.constant 0 : index
    %c0_21 = arith.constant 0 : index
    %31 = vector.load %arg3[%c2_19, %c0_20, %c0_21] : memref<3x12x16xbf16, #tpu.memory_space<vmem>>, vector<1x12x16xbf16>
    %32 = vector.shape_cast %31 : vector<1x12x16xbf16> to vector<12x16xbf16>
    %cst_22 = arith.constant dense<0.000000e+00> : vector<256x16xf32>
    %33 = tpu.matmul %30, %32, %cst_22 {dimension_numbers = #tpu.dot_dimension_numbers<[1], [0], [0], [1], [0, 0, 1, 1], [], []>} : vector<256x12xbf16>, vector<12x16xbf16>, vector<256x16xf32> -> vector<256x16xf32>
    %34 = arith.addf %22, %33 : vector<256x16xf32>
    %c0_23 = arith.constant 0 : index
    %c0_24 = arith.constant 0 : index
    %35 = vector.load %arg4[%c0_23, %c0_24] : memref<1x16xf32, #tpu.memory_space<vmem>>, vector<1x16xf32>
    %36 = vector.broadcast %35 : vector<1x16xf32> to vector<256x16xf32>
    %37 = arith.addf %34, %36 : vector<256x16xf32>
    %c0_25 = arith.constant 0 : index
    %38 = memref.load %arg5[%c0_25] : memref<1xf32, #tpu.memory_space<smem>>
    %cst_26 = arith.constant 0.000000e+00 : f32
    %39 = vector.broadcast %cst_26 : f32 to vector<256x16xf32>
    %40 = arith.cmpf oge, %37, %39 : vector<256x16xf32>
    %41 = vector.broadcast %38 : f32 to vector<256x16xf32>
    %42 = arith.mulf %41, %37 : vector<256x16xf32>
    %43 = arith.select %40, %37, %42 : vector<256x16xi1>, vector<256x16xf32>
    %c0_27 = arith.constant 0 : index
    %c0_28 = arith.constant 0 : index
    %c0_29 = arith.constant 0 : index
    %44 = vector.load %arg6[%c0_27, %c0_28, %c0_29] : memref<1x256x16xf32, #tpu.memory_space<vmem>>, vector<1x256x16xf32>
    %45 = vector.shape_cast %44 : vector<1x256x16xf32> to vector<256x16xf32>
    %46 = vector.shape_cast %43 : vector<256x16xf32> to vector<1x256x16xf32>
    tpu.vector_store %arg6[%c0_27, %c0_28, %c0_29], %46 {strides = array<i32>} : memref<1x256x16xf32, #tpu.memory_space<vmem>>, vector<1x256x16xf32>,
    return
  }
  func.func @transform_0(%arg0: i32, %arg1: i32) -> (i32, i32, i32, i32, i32) {
    %c0_i32 = arith.constant 0 : i32
    %c0_i32_0 = arith.constant 0 : i32
    %c0_i32_1 = arith.constant 0 : i32
    %c0_i32_2 = arith.constant 0 : i32
    return %arg0, %arg1, %c0_i32, %c0_i32_0, %c0_i32_1 : i32, i32, i32, i32, i32
  }
  func.func @transform_1(%arg0: i32, %arg1: i32) -> (i32, i32, i32) {
    %c0_i32 = arith.constant 0 : i32
    %c0_i32_0 = arith.constant 0 : i32
    %c0_i32_1 = arith.constant 0 : i32
    %c0_i32_2 = arith.constant 0 : i32
    return %c0_i32, %c0_i32_0, %c0_i32_1 : i32, i32, i32
  }
  func.func @transform_2(%arg0: i32, %arg1: i32) -> (i32, i32) {
    %c0_i32 = arith.constant 0 : i32
    %c0_i32_0 = arith.constant 0 : i32
    %c0_i32_1 = arith.constant 0 : i32
    return %c0_i32, %c0_i32_0 : i32, i32
  }
  func.func @transform_3(%arg0: i32, %arg1: i32) -> i32 {
    %c0_i32 = arith.constant 0 : i32
    %c0_i32_0 = arith.constant 0 : i32
    return %c0_i32 : i32
  }
  func.func @transform_4(%arg0: i32, %arg1: i32) -> (i32, i32, i32) {
    %c0_i32 = arith.constant 0 : i32
    %c0_i32_0 = arith.constant 0 : i32
    return %arg0, %arg1, %c0_i32 : i32, i32, i32
  }
}

</mosaic_0001>

<llo_original>
// kernel: _forward_impl.1
$region0: #{_forward_impl.1}
  #allocation0 [shape = 'u32[]', space=smem, size = 0x4, offset = 0x4, fixed_abs, tag = 'smem constant byte address 0x4 - core index']
  #allocation1 [shape = 'u32[144,128]{1,0:T(1,128)}', space=vmem, size = 0x12000, scoped, tag = 'internal scratch']
  #allocation2 [shape = 'f32[1]{0:T(128)S(6)}', space=smem, size = 0x200, scoped, tag = 'scoped memory for _forward_impl.1']
  %s0 = inlined_call_operand.vmem [shape: f32[2,1,18,18,4], index: 0, kind: input, shape index: {}]
  %s1 = inlined_call_operand.vmem [shape: bf16[3,12,16], index: 1, kind: input, shape index: {}]
  %s2 = inlined_call_operand.vmem [shape: f32[1,16], index: 2, kind: input, shape index: {}]
  %s3 = inlined_call_operand.<no memory space> [shape: f32[1], index: 3, kind: input, shape index: {}]
  %s4 = inlined_call_operand.vmem [shape: f32[2,256,16], index: 4, kind: output, shape index: {}]
  %s5 = sld [smem:[#allocation0]]
  $region49: #{_forward_impl.1} parent=0
    _
  %s7 = ssub.s32 1, %s5
  %s8 = scalar_select 0, %s7, %s5
  %9 = sst [smem:[#allocation2]] %s3
  loop: start=0, step=1, limit=4
  $region2: #{_forward_impl.1} parent=0 // loop_pre_header
    _
  $region3: #{_forward_impl.1} parent=0 // loop_header
    %s11 = sphi 0, %s15
    %p12 = scmp.ge.s32.totalorder %s11, 4
    %s18 = sphi 0, %s30
    %s19 = sphi 0, %s26
    %s20 = sphi 0, %s18
    %s21 = sphi 0, %s19
    %s22 = sphi 0, %s20
    %s23 = sphi 0, %s21
    %s35 = sphi 0, %s37
    %s38 = sphi 0, %s35
    %s39 = sphi 0, %s38
    %s55 = sphi 0, %s39
    %s59 = sphi 0, %s59
    %s61 = sphi 0, %s59
    %s62 = sphi 0, %s61
    %s76 = sphi 0, %s62
    %s80 = sphi 0, %s80
    %s82 = sphi 0, %s80
    %s83 = sphi 0, %s82
    %s97 = sphi 0, %s83
    %s101 = sphi 0, %s101
    %s103 = sphi 0, %s101
    %s104 = sphi 0, %s103
    %s118 = sphi 0, %s104
    %s126 = sphi 0, %s128
    %s129 = sphi 0, %s126
    %s130 = sphi 0, %s129
    %s146 = sphi 0, %s130
  $region4: #{_forward_impl.1} parent=0 // loop_header_branch
    %14 = sbr.rel (%p12) target = $region8
  $region5: #{_forward_impl.1} parent=0 // loop_body
    %s16 = ssub.s32 %s11, 1
    %s17 = ssub.s32 %s11, 2
    %s24 = sadd.s32 1, %s19
    %p25 = scmp.ge.s32.totalorder %s24, 1
    %s26 = scalar_select %p25, 0, %s24
    %s27 = sadd.s32 1, %s18
    %s28 = scalar_select %p25, %s27, %s18
    %p29 = scmp.ge.s32.totalorder %s28, 2
    %s30 = scalar_select %p29, 0, %s28
    %s31 = ssub.s32 %s18, %s30
    %s32 = ssub.s32 %s19, %s26
    %s33 = sor.u32 %s31, %s32
    %p34 = scmp.eq.s32.totalorder %s33, 0
    %s36 = sadd.s32 %s35, 1
    %s37 = scalar_select %p34, %s35, %s36
    %p40 = pneg %p34
    %p41 = scmp.eq.s32.totalorder %s11, 1
    %p42 = por %p40, %p41
    %p43 = scmp.ne.s32.totalorder %s35, %s38
    %p44 = scmp.eq.s32.totalorder %s11, 0
    %p45 = por %p43, %p44
    %p46 = scmp.ne.s32.totalorder %s35, %s38
    %p47 = scmp.eq.s32.totalorder %s16, 1
    %p48 = por %p46, %p47
    %p49 = scmp.ne.s32.totalorder %s38, %s39
    %p50 = scmp.eq.s32.totalorder %s16, 0
    %p51 = por %p49, %p50
    %p52 = scmp.ne.s32.totalorder %s38, %s39
    %p53 = scmp.eq.s32.totalorder %s17, 1
    %p54 = por %p52, %p53
    %p56 = scmp.ne.s32.totalorder %s39, %s55
    %p57 = scmp.eq.s32.totalorder %s17, 0
    %p58 = por %p56, %p57
    %s60 = sadd.s32 %s59, 1
    %p63 = scmp.eq.s32.totalorder %s11, 1
    %p64 = scmp.ne.s32.totalorder %s59, %s61
    %p65 = scmp.eq.s32.totalorder %s11, 0
    %p66 = por %p64, %p65
    %p67 = scmp.ne.s32.totalorder %s59, %s61
    %p68 = scmp.eq.s32.totalorder %s16, 1
    %p69 = por %p67, %p68
    %p70 = scmp.ne.s32.totalorder %s61, %s62
    %p71 = scmp.eq.s32.totalorder %s16, 0
    %p72 = por %p70, %p71
    %p73 = scmp.ne.s32.totalorder %s61, %s62
    %p74 = scmp.eq.s32.totalorder %s17, 1
    %p75 = por %p73, %p74
    %p77 = scmp.ne.s32.totalorder %s62, %s76
    %p78 = scmp.eq.s32.totalorder %s17, 0
    %p79 = por %p77, %p78
    %s81 = sadd.s32 %s80, 1
    %p84 = scmp.eq.s32.totalorder %s11, 1
    %p85 = scmp.ne.s32.totalorder %s80, %s82
    %p86 = scmp.eq.s32.totalorder %s11, 0
    %p87 = por %p85, %p86
    %p88 = scmp.ne.s32.totalorder %s80, %s82
    %p89 = scmp.eq.s32.totalorder %s16, 1
    %p90 = por %p88, %p89
    %p91 = scmp.ne.s32.totalorder %s82, %s83
    %p92 = scmp.eq.s32.totalorder %s16, 0
    %p93 = por %p91, %p92
    %p94 = scmp.ne.s32.totalorder %s82, %s83
    %p95 = scmp.eq.s32.totalorder %s17, 1
    %p96 = por %p94, %p95
    %p98 = scmp.ne.s32.totalorder %s83, %s97
    %p99 = scmp.eq.s32.totalorder %s17, 0
    %p100 = por %p98, %p99
    %s102 = sadd.s32 %s101, 1
    %p105 = scmp.eq.s32.totalorder %s11, 1
    %p106 = scmp.ne.s32.totalorder %s101, %s103
    %p107 = scmp.eq.s32.totalorder %s11, 0
    %p108 = por %p106, %p107
    %p109 = scmp.ne.s32.totalorder %s101, %s103
    %p110 = scmp.eq.s32.totalorder %s16, 1
    %p111 = por %p109, %p110
    %p112 = scmp.ne.s32.totalorder %s103, %s104
    %p113 = scmp.eq.s32.totalorder %s16, 0
    %p114 = por %p112, %p113
    %p115 = scmp.ne.s32.totalorder %s103, %s104
    %p116 = scmp.eq.s32.totalorder %s17, 1
    %p117 = por %p115, %p116
    %p119 = scmp.ne.s32.totalorder %s104, %s118
    %p120 = scmp.eq.s32.totalorder %s17, 0
    %p121 = por %p119, %p120
    %s122 = ssub.s32 %s18, %s30
    %s123 = ssub.s32 %s19, %s26
    %s124 = sor.u32 %s122, %s123
    %p125 = scmp.eq.s32.totalorder %s124, 0
    %s127 = sadd.s32 %s126, 1
    %s128 = scalar_select %p125, %s126, %s127
    %p131 = pneg %p125
    %p132 = scmp.eq.s32.totalorder %s11, 1
    %p133 = por %p131, %p132
    %p134 = scmp.ne.s32.totalorder %s126, %s129
    %p135 = scmp.eq.s32.totalorder %s11, 0
    %p136 = por %p134, %p135
    %p137 = scmp.ne.s32.totalorder %s126, %s129
    %p138 = scmp.eq.s32.totalorder %s16, 1
    %p139 = por %p137, %p138
    %p140 = scmp.ne.s32.totalorder %s129, %s130
    %p141 = scmp.eq.s32.totalorder %s16, 0
    %p142 = por %p140, %p141
    %p143 = scmp.ne.s32.totalorder %s129, %s130
    %p144 = scmp.eq.s32.totalorder %s17, 1
    %p145 = por %p143, %p144
    %p147 = scmp.ne.s32.totalorder %s130, %s146
    %p148 = scmp.eq.s32.totalorder %s17, 0
    %p149 = por %p147, %p148
    %p150 = scmp.le.s32.totalorder 1, %s11
    %p151 = scmp.lt.s32.totalorder %s11, 3
    %p152 = pnand %p150, %p151
    %p153 = pneg %p152
    // Predicated region
    $region9: #{_forward_impl.1} parent=5 // pred_check
      _
    $region10: #{_forward_impl.1} parent=5 // pred_check_branch
      %155 = sbr.rel (%p152) target = $region12
    $region11: #{_forward_impl.1} parent=5 // pred_region
      %s156 = ssub.s32 %s11, 1
      // Predicated region
      $region13: #{_forward_impl.1} parent=11 // pred_check
        %p157 = pneg %p72
      $region14: #{_forward_impl.1} parent=11 // pred_check_branch
        %159 = sbr.rel (%p157) target = $region16
      $region15: #{_forward_impl.1} parent=11 // pred_region
        _
      $region16: #{_forward_impl.1} parent=11 // pred_fallthru
        _
      // Predicated region
      $region17: #{_forward_impl.1} parent=11 // pred_check
        %p160 = pneg %p93
      $region18: #{_forward_impl.1} parent=11 // pred_check_branch
        %162 = sbr.rel (%p160) target = $region20
      $region19: #{_forward_impl.1} parent=11 // pred_region
        _
      $region20: #{_forward_impl.1} parent=11 // pred_fallthru
        _
      // Predicated region
      $region21: #{_forward_impl.1} parent=11 // pred_check
        %p163 = pneg %p114
      $region22: #{_forward_impl.1} parent=11 // pred_check_branch
        %165 = sbr.rel (%p163) target = $region24
      $region23: #{_forward_impl.1} parent=11 // pred_region
        _
      $region24: #{_forward_impl.1} parent=11 // pred_fallthru
        _
    $region12: #{_forward_impl.1} parent=5 // pred_fallthru
      _
    %p166 = scmp.lt.s32.totalorder %s11, 2
    // Predicated region
    $region25: #{_forward_impl.1} parent=5 // pred_check
      %p167 = pneg %p166
    $region26: #{_forward_impl.1} parent=5 // pred_check_branch
      %169 = sbr.rel (%p167) target = $region28
    $region27: #{_forward_impl.1} parent=5 // pred_region
      // Predicated region
      $region29: #{_forward_impl.1} parent=27 // pred_check
        %p170 = pneg %p45
      $region30: #{_forward_impl.1} parent=27 // pred_check_branch
        %172 = sbr.rel (%p170) target = $region32
      $region31: #{_forward_impl.1} parent=27 // pred_region
        %p173 = scmp.lt.s32.totalorder %s18, 1
        %s174 = scalar_select %p173, %s18, 1
        %p175 = scmp.lt.s32.totalorder %s19, 0
        %s176 = scalar_select %p175, %s19, 0
        %s177 = smul.addr %s176, 54
        %s178 = smul.addr %s174, 54
        %s179 = sadd.s32 %s177, %s178
        %s180 = smul.addr %s179, 8
        %s181 = scalar_lea.vmem %s0, %s180
      $region32: #{_forward_impl.1} parent=27 // pred_fallthru
        _
    $region28: #{_forward_impl.1} parent=5 // pred_fallthru
      _
    %p182 = scmp.le.s32.totalorder 1, %s11
    %p183 = scmp.lt.s32.totalorder %s11, 3
    %p184 = pnand %p182, %p183
    %p185 = pneg %p184
    // Predicated region
    $region33: #{_forward_impl.1} parent=5 // pred_check
      _
    $region34: #{_forward_impl.1} parent=5 // pred_check_branch
      %187 = sbr.rel (%p184) target = $region36
    $region35: #{_forward_impl.1} parent=5 // pred_region
      %s188 = ssub.s32 %s11, 1
      %p189 = scmp.lt.s32.totalorder %s20, 1
      %s190 = scalar_select %p189, %s20, 1
      %p191 = scmp.lt.s32.totalorder %s21, 0
      %s192 = scalar_select %p191, %s21, 0
      %s193 = smul.addr %s192, 54
      %s194 = smul.addr %s190, 54
      %s195 = sadd.s32 %s193, %s194
      %s196 = smul.addr %s195, 8
      %s197 = scalar_lea.vmem %s0, %s196
      %p198 = pneg %p51
      %p199 = pneg %p48
      %p200 = pneg %p72
      %p201 = pneg %p69
      %p202 = pneg %p93
      %p203 = pneg %p90
      %p204 = pneg %p114
      %p205 = pneg %p111
      %p206 = pneg %p142
      %p207 = pneg %p139
      %s208 = smul.u32 32, %s21
      %p209 = scmp.lt.s32.totalorder %s20, 1
      %s210 = scalar_select %p209, %s20, 1
      %p211 = scmp.lt.s32.totalorder %s208, 31
      %s212 = scalar_select %p211, %s208, 31
      %s213 = smul.addr %s210, 32
      %s214 = sadd.s32 %s212, %s213
      %s215 = smul.addr %s214, 8
      %s216 = scalar_lea.vmem %s4, %s215
      %p217 = scmp.lt.s32.totalorder %s20, 1
      %s218 = scalar_select %p217, %s20, 1
      %p219 = scmp.lt.s32.totalorder %s21, 0
      %s220 = scalar_select %p219, %s21, 0
      %s221 = smul.addr %s220, 54
      %s222 = smul.addr %s218, 54
      %s223 = sadd.s32 %s221, %s222
      %s224 = smul.addr %s223, 8
      %s225 = scalar_lea.vmem %s0, %s224
      %s226 = smul.u32 32, %s21
      %p227 = scmp.lt.s32.totalorder %s20, 1
      %s228 = scalar_select %p227, %s20, 1
      %p229 = scmp.lt.s32.totalorder %s226, 31
      %s230 = scalar_select %p229, %s226, 31
      %s231 = smul.addr %s228, 32
      %s232 = sadd.s32 %s230, %s231
      %s233 = smul.addr %s232, 8
      %s234 = scalar_lea.vmem %s4, %s233
      %s235 = smul.u32 32, %s21
      %v237 = vld [vmem:[%s225] sm:$0xff]
      %v238 = vld [vmem:[%s225 + $0x8] sm:$0xff]
      %v239 = vld [vmem:[%s225 + $0x10] sm:$0x3]
      %v240 = vld [vmem:[%s225 + $0x18] sm:$0xff]
      %v241 = vld [vmem:[%s225 + $0x20] sm:$0xff]
      %v242 = vld [vmem:[%s225 + $0x28] sm:$0x3]
      %v243 = vld [vmem:[%s225 + $0x30] sm:$0xff]
      %v244 = vld [vmem:[%s225 + $0x38] sm:$0xff]
      %v245 = vld [vmem:[%s225 + $0x40] sm:$0x3]
      %v246 = vld [vmem:[%s225 + $0x48] sm:$0xff]
      %v247 = vld [vmem:[%s225 + $0x50] sm:$0xff]
      %v248 = vld [vmem:[%s225 + $0x58] sm:$0x3]
      %v249 = vld [vmem:[%s225 + $0x60] sm:$0xff]
      %v250 = vld [vmem:[%s225 + $0x68] sm:$0xff]
      %v251 = vld [vmem:[%s225 + $0x70] sm:$0x3]
      %v252 = vld [vmem:[%s225 + $0x78] sm:$0xff]
      %v253 = vld [vmem:[%s225 + $0x80] sm:$0xff]
      %v254 = vld [vmem:[%s225 + $0x88] sm:$0x3]
      %v255 = vld [vmem:[%s225 + $0x90] sm:$0xff]
      %v256 = vld [vmem:[%s225 + $0x98] sm:$0xff]
      %v257 = vld [vmem:[%s225 + $0xa0] sm:$0x3]
      %v258 = vld [vmem:[%s225 + $0xa8] sm:$0xff]
      %v259 = vld [vmem:[%s225 + $0xb0] sm:$0xff]
      %v260 = vld [vmem:[%s225 + $0xb8] sm:$0x3]
      %v261 = vld [vmem:[%s225 + $0xc0] sm:$0xff]
      %v262 = vld [vmem:[%s225 + $0xc8] sm:$0xff]
      %v263 = vld [vmem:[%s225 + $0xd0] sm:$0x3]
      %v264 = vld [vmem:[%s225 + $0xd8] sm:$0xff]
      %v265 = vld [vmem:[%s225 + $0xe0] sm:$0xff]
      %v266 = vld [vmem:[%s225 + $0xe8] sm:$0x3]
      %v267 = vld [vmem:[%s225 + $0xf0] sm:$0xff]
      %v268 = vld [vmem:[%s225 + $0xf8] sm:$0xff]
      %v269 = vld [vmem:[%s225 + $0x100] sm:$0x3]
      %v270 = vld [vmem:[%s225 + $0x108] sm:$0xff]
      %v271 = vld [vmem:[%s225 + $0x110] sm:$0xff]
      %v272 = vld [vmem:[%s225 + $0x118] sm:$0x3]
      %v273 = vld [vmem:[%s225 + $0x120] sm:$0xff]
      %v274 = vld [vmem:[%s225 + $0x128] sm:$0xff]
      %v275 = vld [vmem:[%s225 + $0x130] sm:$0x3]
      %v276 = vld [vmem:[%s225 + $0x138] sm:$0xff]
      %v277 = vld [vmem:[%s225 + $0x140] sm:$0xff]
      %v278 = vld [vmem:[%s225 + $0x148] sm:$0x3]
      %v279 = vld [vmem:[%s225 + $0x150] sm:$0xff]
      %v280 = vld [vmem:[%s225 + $0x158] sm:$0xff]
      %v281 = vld [vmem:[%s225 + $0x160] sm:$0x3]
      %v282 = vld [vmem:[%s225 + $0x168] sm:$0xff]
      %v283 = vld [vmem:[%s225 + $0x170] sm:$0xff]
      %v284 = vld [vmem:[%s225 + $0x178] sm:$0x3]
      %vm333 = vcmask 1046528
      %v334 = vrot.slane %v237, 1
      %v335 = vrot.slane %v238, 1
      %v336 = vsel %vm333, %v334, %v335
      %v337 = vrot.slane %v239, 1
      %v338 = vsel %vm333, %v335, %v337
      %v339 = vrot.slane %v240, 1
      %v340 = vrot.slane %v241, 1
      %v341 = vsel %vm333, %v339, %v340
      %v342 = vrot.slane %v242, 1
      %v343 = vsel %vm333, %v340, %v342
      %v344 = vrot.slane %v243, 1
      %v345 = vrot.slane %v244, 1
      %v346 = vsel %vm333, %v344, %v345
      %v347 = vrot.slane %v245, 1
      %v348 = vsel %vm333, %v345, %v347
      %v349 = vrot.slane %v246, 1
      %v350 = vrot.slane %v247, 1
      %v351 = vsel %vm333, %v349, %v350
      %v352 = vrot.slane %v248, 1
      %v353 = vsel %vm333, %v350, %v352
      %v354 = vrot.slane %v249, 1
      %v355 = vrot.slane %v250, 1
      %v356 = vsel %vm333, %v354, %v355
      %v357 = vrot.slane %v251, 1
      %v358 = vsel %vm333, %v355, %v357
      %v359 = vrot.slane %v252, 1
      %v360 = vrot.slane %v253, 1
      %v361 = vsel %vm333, %v359, %v360
      %v362 = vrot.slane %v254, 1
      %v363 = vsel %vm333, %v360, %v362
      %v364 = vrot.slane %v255, 1
      %v365 = vrot.slane %v256, 1
      %v366 = vsel %vm333, %v364, %v365
      %v367 = vrot.slane %v257, 1
      %v368 = vsel %vm333, %v365, %v367
      %v369 = vrot.slane %v258, 1
      %v370 = vrot.slane %v259, 1
      %v371 = vsel %vm333, %v369, %v370
      %v372 = vrot.slane %v260, 1
      %v373 = vsel %vm333, %v370, %v372
      %v374 = vrot.slane %v261, 1
      %v375 = vrot.slane %v262, 1
      %v376 = vsel %vm333, %v374, %v375
      %v377 = vrot.slane %v263, 1
      %v378 = vsel %vm333, %v375, %v377
      %v379 = vrot.slane %v264, 1
      %v380 = vrot.slane %v265, 1
      %v381 = vsel %vm333, %v379, %v380
      %v382 = vrot.slane %v266, 1
      %v383 = vsel %vm333, %v380, %v382
      %v384 = vrot.slane %v267, 1
      %v385 = vrot.slane %v268, 1
      %v386 = vsel %vm333, %v384, %v385
      %v387 = vrot.slane %v269, 1
      %v388 = vsel %vm333, %v385, %v387
      %v389 = vrot.slane %v270, 1
      %v390 = vrot.slane %v271, 1
      %v391 = vsel %vm333, %v389, %v390
      %v392 = vrot.slane %v272, 1
      %v393 = vsel %vm333, %v390, %v392
      %v394 = vrot.slane %v273, 1
      %v395 = vrot.slane %v274, 1
      %v396 = vsel %vm333, %v394, %v395
      %v397 = vrot.slane %v275, 1
      %v398 = vsel %vm333, %v395, %v397
      %v399 = vrot.slane %v276, 1
      %v400 = vrot.slane %v277, 1
      %v401 = vsel %vm333, %v399, %v400
      %v402 = vrot.slane %v278, 1
      %v403 = vsel %vm333, %v400, %v402
      %v404 = vrot.slane %v279, 1
      %v405 = vrot.slane %v280, 1
      %v406 = vsel %vm333, %v404, %v405
      %v407 = vrot.slane %v281, 1
      %v408 = vsel %vm333, %v405, %v407
      %v409 = vrot.slane %v282, 1
      %v410 = vrot.slane %v283, 1
      %v411 = vsel %vm333, %v409, %v410
      %v412 = vrot.slane %v284, 1
      %v413 = vsel %vm333, %v410, %v412
      %414 = vrot.lane.b32.xlu0 %v336, 4
      %v415 = vpop.permute.xlu0 %414
      %416 = vrot.lane.b32.xlu0 %v338, 4
      %v417 = vpop.permute.xlu0 %416
      %418 = vrot.lane.b32.xlu0 %v341, 4
      %v419 = vpop.permute.xlu0 %418
      %420 = vrot.lane.b32.xlu0 %v343, 4
      %v421 = vpop.permute.xlu0 %420
      %422 = vrot.lane.b32.xlu0 %v346, 4
      %v423 = vpop.permute.xlu0 %422
      %424 = vrot.lane.b32.xlu0 %v348, 4
      %v425 = vpop.permute.xlu0 %424
      %426 = vrot.lane.b32.xlu0 %v351, 4
      %v427 = vpop.permute.xlu0 %426
      %428 = vrot.lane.b32.xlu0 %v353, 4
      %v429 = vpop.permute.xlu0 %428
      %430 = vrot.lane.b32.xlu0 %v356, 4
      %v431 = vpop.permute.xlu0 %430
      %432 = vrot.lane.b32.xlu0 %v358, 4
      %v433 = vpop.permute.xlu0 %432
      %434 = vrot.lane.b32.xlu0 %v361, 4
      %v435 = vpop.permute.xlu0 %434
      %436 = vrot.lane.b32.xlu0 %v363, 4
      %v437 = vpop.permute.xlu0 %436
      %438 = vrot.lane.b32.xlu0 %v366, 4
      %v439 = vpop.permute.xlu0 %438
      %440 = vrot.lane.b32.xlu0 %v368, 4
      %v441 = vpop.permute.xlu0 %440
      %442 = vrot.lane.b32.xlu0 %v371, 4
      %v443 = vpop.permute.xlu0 %442
      %444 = vrot.lane.b32.xlu0 %v373, 4
      %v445 = vpop.permute.xlu0 %444
      %446 = vrot.lane.b32.xlu0 %v376, 4
      %v447 = vpop.permute.xlu0 %446
      %448 = vrot.lane.b32.xlu0 %v378, 4
      %v449 = vpop.permute.xlu0 %448
      %450 = vrot.lane.b32.xlu0 %v381, 4
      %v451 = vpop.permute.xlu0 %450
      %452 = vrot.lane.b32.xlu0 %v383, 4
      %v453 = vpop.permute.xlu0 %452
      %454 = vrot.lane.b32.xlu0 %v386, 4
      %v455 = vpop.permute.xlu0 %454
      %456 = vrot.lane.b32.xlu0 %v388, 4
      %v457 = vpop.permute.xlu0 %456
      %458 = vrot.lane.b32.xlu0 %v391, 4
      %v459 = vpop.permute.xlu0 %458
      %460 = vrot.lane.b32.xlu0 %v393, 4
      %v461 = vpop.permute.xlu0 %460
      %462 = vrot.lane.b32.xlu0 %v396, 4
      %v463 = vpop.permute.xlu0 %462
      %464 = vrot.lane.b32.xlu0 %v398, 4
      %v465 = vpop.permute.xlu0 %464
      %466 = vrot.lane.b32.xlu0 %v401, 4
      %v467 = vpop.permute.xlu0 %466
      %468 = vrot.lane.b32.xlu0 %v403, 4
      %v469 = vpop.permute.xlu0 %468
      %470 = vrot.lane.b32.xlu0 %v406, 4
      %v471 = vpop.permute.xlu0 %470
      %472 = vrot.lane.b32.xlu0 %v408, 4
      %v473 = vpop.permute.xlu0 %472
      %474 = vrot.lane.b32.xlu0 %v411, 4
      %v475 = vpop.permute.xlu0 %474
      %476 = vrot.lane.b32.xlu0 %v413, 4
      %v477 = vpop.permute.xlu0 %476
      %vm510 = vcmask 1045504
      %v511 = vrot.slane %v237, 2
      %v512 = vrot.slane %v238, 2
      %v513 = vsel %vm510, %v511, %v512
      %v514 = vrot.slane %v239, 2
      %v515 = vsel %vm510, %v512, %v514
      %v516 = vrot.slane %v240, 2
      %v517 = vrot.slane %v241, 2
      %v518 = vsel %vm510, %v516, %v517
      %v519 = vrot.slane %v242, 2
      %v520 = vsel %vm510, %v517, %v519
      %v521 = vrot.slane %v243, 2
      %v522 = vrot.slane %v244, 2
      %v523 = vsel %vm510, %v521, %v522
      %v524 = vrot.slane %v245, 2
      %v525 = vsel %vm510, %v522, %v524
      %v526 = vrot.slane %v246, 2
      %v527 = vrot.slane %v247, 2
      %v528 = vsel %vm510, %v526, %v527
      %v529 = vrot.slane %v248, 2
      %v530 = vsel %vm510, %v527, %v529
      %v531 = vrot.slane %v249, 2
      %v532 = vrot.slane %v250, 2
      %v533 = vsel %vm510, %v531, %v532
      %v534 = vrot.slane %v251, 2
      %v535 = vsel %vm510, %v532, %v534
      %v536 = vrot.slane %v252, 2
      %v537 = vrot.slane %v253, 2
      %v538 = vsel %vm510, %v536, %v537
      %v539 = vrot.slane %v254, 2
      %v540 = vsel %vm510, %v537, %v539
      %v541 = vrot.slane %v255, 2
      %v542 = vrot.slane %v256, 2
      %v543 = vsel %vm510, %v541, %v542
      %v544 = vrot.slane %v257, 2
      %v545 = vsel %vm510, %v542, %v544
      %v546 = vrot.slane %v258, 2
      %v547 = vrot.slane %v259, 2
      %v548 = vsel %vm510, %v546, %v547
      %v549 = vrot.slane %v260, 2
      %v550 = vsel %vm510, %v547, %v549
      %v551 = vrot.slane %v261, 2
      %v552 = vrot.slane %v262, 2
      %v553 = vsel %vm510, %v551, %v552
      %v554 = vrot.slane %v263, 2
      %v555 = vsel %vm510, %v552, %v554
      %v556 = vrot.slane %v264, 2
      %v557 = vrot.slane %v265, 2
      %v558 = vsel %vm510, %v556, %v557
      %v559 = vrot.slane %v266, 2
      %v560 = vsel %vm510, %v557, %v559
      %v561 = vrot.slane %v267, 2
      %v562 = vrot.slane %v268, 2
      %v563 = vsel %vm510, %v561, %v562
      %v564 = vrot.slane %v269, 2
      %v565 = vsel %vm510, %v562, %v564
      %v566 = vrot.slane %v270, 2
      %v567 = vrot.slane %v271, 2
      %v568 = vsel %vm510, %v566, %v567
      %v569 = vrot.slane %v272, 2
      %v570 = vsel %vm510, %v567, %v569
      %v571 = vrot.slane %v273, 2
      %v572 = vrot.slane %v274, 2
      %v573 = vsel %vm510, %v571, %v572
      %v574 = vrot.slane %v275, 2
      %v575 = vsel %vm510, %v572, %v574
      %v576 = vrot.slane %v276, 2
      %v577 = vrot.slane %v277, 2
      %v578 = vsel %vm510, %v576, %v577
      %v579 = vrot.slane %v278, 2
      %v580 = vsel %vm510, %v577, %v579
      %v581 = vrot.slane %v279, 2
      %v582 = vrot.slane %v280, 2
      %v583 = vsel %vm510, %v581, %v582
      %v584 = vrot.slane %v281, 2
      %v585 = vsel %vm510, %v582, %v584
      %v586 = vrot.slane %v282, 2
      %v587 = vrot.slane %v283, 2
      %v588 = vsel %vm510, %v586, %v587
      %v589 = vrot.slane %v284, 2
      %v590 = vsel %vm510, %v587, %v589
      %591 = vrot.lane.b32.xlu0 %v513, 8
      %v592 = vpop.permute.xlu0 %591
      %593 = vrot.lane.b32.xlu0 %v515, 8
      %v594 = vpop.permute.xlu0 %593
      %595 = vrot.lane.b32.xlu0 %v518, 8
      %v596 = vpop.permute.xlu0 %595
      %597 = vrot.lane.b32.xlu0 %v520, 8
      %v598 = vpop.permute.xlu0 %597
      %599 = vrot.lane.b32.xlu0 %v523, 8
      %v600 = vpop.permute.xlu0 %599
      %601 = vrot.lane.b32.xlu0 %v525, 8
      %v602 = vpop.permute.xlu0 %601
      %603 = vrot.lane.b32.xlu0 %v528, 8
      %v604 = vpop.permute.xlu0 %603
      %605 = vrot.lane.b32.xlu0 %v530, 8
      %v606 = vpop.permute.xlu0 %605
      %607 = vrot.lane.b32.xlu0 %v533, 8
      %v608 = vpop.permute.xlu0 %607
      %609 = vrot.lane.b32.xlu0 %v535, 8
      %v610 = vpop.permute.xlu0 %609
      %611 = vrot.lane.b32.xlu0 %v538, 8
      %v612 = vpop.permute.xlu0 %611
      %613 = vrot.lane.b32.xlu0 %v540, 8
      %v614 = vpop.permute.xlu0 %613
      %615 = vrot.lane.b32.xlu0 %v543, 8
      %v616 = vpop.permute.xlu0 %615
      %617 = vrot.lane.b32.xlu0 %v545, 8
      %v618 = vpop.permute.xlu0 %617
      %619 = vrot.lane.b32.xlu0 %v548, 8
      %v620 = vpop.permute.xlu0 %619
      %621 = vrot.lane.b32.xlu0 %v550, 8
      %v622 = vpop.permute.xlu0 %621
      %623 = vrot.lane.b32.xlu0 %v553, 8
      %v624 = vpop.permute.xlu0 %623
      %625 = vrot.lane.b32.xlu0 %v555, 8
      %v626 = vpop.permute.xlu0 %625
      %627 = vrot.lane.b32.xlu0 %v558, 8
      %v628 = vpop.permute.xlu0 %627
      %629 = vrot.lane.b32.xlu0 %v560, 8
      %v630 = vpop.permute.xlu0 %629
      %631 = vrot.lane.b32.xlu0 %v563, 8
      %v632 = vpop.permute.xlu0 %631
      %633 = vrot.lane.b32.xlu0 %v565, 8
      %v634 = vpop.permute.xlu0 %633
      %635 = vrot.lane.b32.xlu0 %v568, 8
      %v636 = vpop.permute.xlu0 %635
      %637 = vrot.lane.b32.xlu0 %v570, 8
      %v638 = vpop.permute.xlu0 %637
      %639 = vrot.lane.b32.xlu0 %v573, 8
      %v640 = vpop.permute.xlu0 %639
      %641 = vrot.lane.b32.xlu0 %v575, 8
      %v642 = vpop.permute.xlu0 %641
      %643 = vrot.lane.b32.xlu0 %v578, 8
      %v644 = vpop.permute.xlu0 %643
      %645 = vrot.lane.b32.xlu0 %v580, 8
      %v646 = vpop.permute.xlu0 %645
      %647 = vrot.lane.b32.xlu0 %v583, 8
      %v648 = vpop.permute.xlu0 %647
      %649 = vrot.lane.b32.xlu0 %v585, 8
      %v650 = vpop.permute.xlu0 %649
      %651 = vrot.lane.b32.xlu0 %v588, 8
      %v652 = vpop.permute.xlu0 %651
      %653 = vrot.lane.b32.xlu0 %v590, 8
      %v654 = vpop.permute.xlu0 %653
      %vm687 = vcmask 31744
      %v688 = vsel %vm687, %v237, %v415
      %v689 = vsel %vm687, %v238, %v417
      %v690 = vsel %vm687, %v240, %v419
      %v691 = vsel %vm687, %v241, %v421
      %v692 = vsel %vm687, %v243, %v423
      %v693 = vsel %vm687, %v244, %v425
      %v694 = vsel %vm687, %v246, %v427
      %v695 = vsel %vm687, %v247, %v429
      %v696 = vsel %vm687, %v249, %v431
      %v697 = vsel %vm687, %v250, %v433
      %v698 = vsel %vm687, %v252, %v435
      %v699 = vsel %vm687, %v253, %v437
      %v700 = vsel %vm687, %v255, %v439
      %v701 = vsel %vm687, %v256, %v441
      %v702 = vsel %vm687, %v258, %v443
      %v703 = vsel %vm687, %v259, %v445
      %v704 = vsel %vm687, %v261, %v447
      %v705 = vsel %vm687, %v262, %v449
      %v706 = vsel %vm687, %v264, %v451
      %v707 = vsel %vm687, %v265, %v453
      %v708 = vsel %vm687, %v267, %v455
      %v709 = vsel %vm687, %v268, %v457
      %v710 = vsel %vm687, %v270, %v459
      %v711 = vsel %vm687, %v271, %v461
      %v712 = vsel %vm687, %v273, %v463
      %v713 = vsel %vm687, %v274, %v465
      %v714 = vsel %vm687, %v276, %v467
      %v715 = vsel %vm687, %v277, %v469
      %v716 = vsel %vm687, %v279, %v471
      %v717 = vsel %vm687, %v280, %v473
      %v718 = vsel %vm687, %v282, %v475
      %v719 = vsel %vm687, %v283, %v477
      %vm720 = vcmask 64512
      %v721 = vsel %vm720, %v688, %v592
      %v722 = vsel %vm720, %v689, %v594
      %v723 = vsel %vm720, %v690, %v596
      %v724 = vsel %vm720, %v691, %v598
      %v725 = vsel %vm720, %v692, %v600
      %v726 = vsel %vm720, %v693, %v602
      %v727 = vsel %vm720, %v694, %v604
      %v728 = vsel %vm720, %v695, %v606
      %v729 = vsel %vm720, %v696, %v608
      %v730 = vsel %vm720, %v697, %v610
      %v731 = vsel %vm720, %v698, %v612
      %v732 = vsel %vm720, %v699, %v614
      %v733 = vsel %vm720, %v700, %v616
      %v734 = vsel %vm720, %v701, %v618
      %v735 = vsel %vm720, %v702, %v620
      %v736 = vsel %vm720, %v703, %v622
      %v737 = vsel %vm720, %v704, %v624
      %v738 = vsel %vm720, %v705, %v626
      %v739 = vsel %vm720, %v706, %v628
      %v740 = vsel %vm720, %v707, %v630
      %v741 = vsel %vm720, %v708, %v632
      %v742 = vsel %vm720, %v709, %v634
      %v743 = vsel %vm720, %v710, %v636
      %v744 = vsel %vm720, %v711, %v638
      %v745 = vsel %vm720, %v712, %v640
      %v746 = vsel %vm720, %v713, %v642
      %v747 = vsel %vm720, %v714, %v644
      %v748 = vsel %vm720, %v715, %v646
      %v749 = vsel %vm720, %v716, %v648
      %v750 = vsel %vm720, %v717, %v650
      %v751 = vsel %vm720, %v718, %v652
      %v752 = vsel %vm720, %v719, %v654
      %v753 = vpack.c.bf16 %v722, %v721
      %v754 = vpack.c.bf16 %v724, %v723
      %v755 = vpack.c.bf16 %v726, %v725
      %v756 = vpack.c.bf16 %v728, %v727
      %v757 = vpack.c.bf16 %v730, %v729
      %v758 = vpack.c.bf16 %v732, %v731
      %v759 = vpack.c.bf16 %v734, %v733
      %v760 = vpack.c.bf16 %v736, %v735
      %v761 = vpack.c.bf16 %v738, %v737
      %v762 = vpack.c.bf16 %v740, %v739
      %v763 = vpack.c.bf16 %v742, %v741
      %v764 = vpack.c.bf16 %v744, %v743
      %v765 = vpack.c.bf16 %v746, %v745
      %v766 = vpack.c.bf16 %v748, %v747
      %v767 = vpack.c.bf16 %v750, %v749
      %v768 = vpack.c.bf16 %v752, %v751
      %v769 = vld [vmem:[%s1] sm:$0xf]
      %v770 = vld [vmem:[%s1 + $0x4] sm:$0x3]
      %s771 = scalar_lea.vmem %s225, 24
      %v772 = vld [vmem:[%s771] sm:$0xff]
      %v773 = vld [vmem:[%s771 + $0x8] sm:$0xff]
      %v774 = vld [vmem:[%s771 + $0x10] sm:$0x3]
      %v775 = vld [vmem:[%s771 + $0x18] sm:$0xff]
      %v776 = vld [vmem:[%s771 + $0x20] sm:$0xff]
      %v777 = vld [vmem:[%s771 + $0x28] sm:$0x3]
      %v778 = vld [vmem:[%s771 + $0x30] sm:$0xff]
      %v779 = vld [vmem:[%s771 + $0x38] sm:$0xff]
      %v780 = vld [vmem:[%s771 + $0x40] sm:$0x3]
      %v781 = vld [vmem:[%s771 + $0x48] sm:$0xff]
      %v782 = vld [vmem:[%s771 + $0x50] sm:$0xff]
      %v783 = vld [vmem:[%s771 + $0x58] sm:$0x3]
      %v784 = vld [vmem:[%s771 + $0x60] sm:$0xff]
      %v785 = vld [vmem:[%s771 + $0x68] sm:$0xff]
      %v786 = vld [vmem:[%s771 + $0x70] sm:$0x3]
      %v787 = vld [vmem:[%s771 + $0x78] sm:$0xff]
      %v788 = vld [vmem:[%s771 + $0x80] sm:$0xff]
      %v789 = vld [vmem:[%s771 + $0x88] sm:$0x3]
      %v790 = vld [vmem:[%s771 + $0x90] sm:$0xff]
      %v791 = vld [vmem:[%s771 + $0x98] sm:$0xff]
      %v792 = vld [vmem:[%s771 + $0xa0] sm:$0x3]
      %v793 = vld [vmem:[%s771 + $0xa8] sm:$0xff]
      %v794 = vld [vmem:[%s771 + $0xb0] sm:$0xff]
      %v795 = vld [vmem:[%s771 + $0xb8] sm:$0x3]
      %v796 = vld [vmem:[%s771 + $0xc0] sm:$0xff]
      %v797 = vld [vmem:[%s771 + $0xc8] sm:$0xff]
      %v798 = vld [vmem:[%s771 + $0xd0] sm:$0x3]
      %v799 = vld [vmem:[%s771 + $0xd8] sm:$0xff]
      %v800 = vld [vmem:[%s771 + $0xe0] sm:$0xff]
      %v801 = vld [vmem:[%s771 + $0xe8] sm:$0x3]
      %v802 = vld [vmem:[%s771 + $0xf0] sm:$0xff]
      %v803 = vld [vmem:[%s771 + $0xf8] sm:$0xff]
      %v804 = vld [vmem:[%s771 + $0x100] sm:$0x3]
      %v805 = vld [vmem:[%s771 + $0x108] sm:$0xff]
      %v806 = vld [vmem:[%s771 + $0x110] sm:$0xff]
      %v807 = vld [vmem:[%s771 + $0x118] sm:$0x3]
      %v808 = vld [vmem:[%s771 + $0x120] sm:$0xff]
      %v809 = vld [vmem:[%s771 + $0x128] sm:$0xff]
      %v810 = vld [vmem:[%s771 + $0x130] sm:$0x3]
      %v811 = vld [vmem:[%s771 + $0x138] sm:$0xff]
      %v812 = vld [vmem:[%s771 + $0x140] sm:$0xff]
      %v813 = vld [vmem:[%s771 + $0x148] sm:$0x3]
      %v814 = vld [vmem:[%s771 + $0x150] sm:$0xff]
      %v815 = vld [vmem:[%s771 + $0x158] sm:$0xff]
      %v816 = vld [vmem:[%s771 + $0x160] sm:$0x3]
      %v817 = vld [vmem:[%s771 + $0x168] sm:$0xff]
      %v818 = vld [vmem:[%s771 + $0x170] sm:$0xff]
      %v819 = vld [vmem:[%s771 + $0x178] sm:$0x3]
      %v868 = vrot.slane %v772, 1
      %v869 = vrot.slane %v773, 1
      %v870 = vsel %vm333, %v868, %v869
      %v871 = vrot.slane %v774, 1
      %v872 = vsel %vm333, %v869, %v871
      %v873 = vrot.slane %v775, 1
      %v874 = vrot.slane %v776, 1
      %v875 = vsel %vm333, %v873, %v874
      %v876 = vrot.slane %v777, 1
      %v877 = vsel %vm333, %v874, %v876
      %v878 = vrot.slane %v778, 1
      %v879 = vrot.slane %v779, 1
      %v880 = vsel %vm333, %v878, %v879
      %v881 = vrot.slane %v780, 1
      %v882 = vsel %vm333, %v879, %v881
      %v883 = vrot.slane %v781, 1
      %v884 = vrot.slane %v782, 1
      %v885 = vsel %vm333, %v883, %v884
      %v886 = vrot.slane %v783, 1
      %v887 = vsel %vm333, %v884, %v886
      %v888 = vrot.slane %v784, 1
      %v889 = vrot.slane %v785, 1
      %v890 = vsel %vm333, %v888, %v889
      %v891 = vrot.slane %v786, 1
      %v892 = vsel %vm333, %v889, %v891
      %v893 = vrot.slane %v787, 1
      %v894 = vrot.slane %v788, 1
      %v895 = vsel %vm333, %v893, %v894
      %v896 = vrot.slane %v789, 1
      %v897 = vsel %vm333, %v894, %v896
      %v898 = vrot.slane %v790, 1
      %v899 = vrot.slane %v791, 1
      %v900 = vsel %vm333, %v898, %v899
      %v901 = vrot.slane %v792, 1
      %v902 = vsel %vm333, %v899, %v901
      %v903 = vrot.slane %v793, 1
      %v904 = vrot.slane %v794, 1
      %v905 = vsel %vm333, %v903, %v904
      %v906 = vrot.slane %v795, 1
      %v907 = vsel %vm333, %v904, %v906
      %v908 = vrot.slane %v796, 1
      %v909 = vrot.slane %v797, 1
      %v910 = vsel %vm333, %v908, %v909
      %v911 = vrot.slane %v798, 1
      %v912 = vsel %vm333, %v909, %v911
      %v913 = vrot.slane %v799, 1
      %v914 = vrot.slane %v800, 1
      %v915 = vsel %vm333, %v913, %v914
      %v916 = vrot.slane %v801, 1
      %v917 = vsel %vm333, %v914, %v916
      %v918 = vrot.slane %v802, 1
      %v919 = vrot.slane %v803, 1
      %v920 = vsel %vm333, %v918, %v919
      %v921 = vrot.slane %v804, 1
      %v922 = vsel %vm333, %v919, %v921
      %v923 = vrot.slane %v805, 1
      %v924 = vrot.slane %v806, 1
      %v925 = vsel %vm333, %v923, %v924
      %v926 = vrot.slane %v807, 1
      %v927 = vsel %vm333, %v924, %v926
      %v928 = vrot.slane %v808, 1
      %v929 = vrot.slane %v809, 1
      %v930 = vsel %vm333, %v928, %v929
      %v931 = vrot.slane %v810, 1
      %v932 = vsel %vm333, %v929, %v931
      %v933 = vrot.slane %v811, 1
      %v934 = vrot.slane %v812, 1
      %v935 = vsel %vm333, %v933, %v934
      %v936 = vrot.slane %v813, 1
      %v937 = vsel %vm333, %v934, %v936
      %v938 = vrot.slane %v814, 1
      %v939 = vrot.slane %v815, 1
      %v940 = vsel %vm333, %v938, %v939
      %v941 = vrot.slane %v816, 1
      %v942 = vsel %vm333, %v939, %v941
      %v943 = vrot.slane %v817, 1
      %v944 = vrot.slane %v818, 1
      %v945 = vsel %vm333, %v943, %v944
      %v946 = vrot.slane %v819, 1
      %v947 = vsel %vm333, %v944, %v946
      %948 = vrot.lane.b32.xlu0 %v870, 4
      %v949 = vpop.permute.xlu0 %948
      %950 = vrot.lane.b32.xlu0 %v872, 4
      %v951 = vpop.permute.xlu0 %950
      %952 = vrot.lane.b32.xlu0 %v875, 4
      %v953 = vpop.permute.xlu0 %952
      %954 = vrot.lane.b32.xlu0 %v877, 4
      %v955 = vpop.permute.xlu0 %954
      %956 = vrot.lane.b32.xlu0 %v880, 4
      %v957 = vpop.permute.xlu0 %956
      %958 = vrot.lane.b32.xlu0 %v882, 4
      %v959 = vpop.permute.xlu0 %958
      %960 = vrot.lane.b32.xlu0 %v885, 4
      %v961 = vpop.permute.xlu0 %960
      %962 = vrot.lane.b32.xlu0 %v887, 4
      %v963 = vpop.permute.xlu0 %962
      %964 = vrot.lane.b32.xlu0 %v890, 4
      %v965 = vpop.permute.xlu0 %964
      %966 = vrot.lane.b32.xlu0 %v892, 4
      %v967 = vpop.permute.xlu0 %966
      %968 = vrot.lane.b32.xlu0 %v895, 4
      %v969 = vpop.permute.xlu0 %968
      %970 = vrot.lane.b32.xlu0 %v897, 4
      %v971 = vpop.permute.xlu0 %970
      %972 = vrot.lane.b32.xlu0 %v900, 4
      %v973 = vpop.permute.xlu0 %972
      %974 = vrot.lane.b32.xlu0 %v902, 4
      %v975 = vpop.permute.xlu0 %974
      %976 = vrot.lane.b32.xlu0 %v905, 4
      %v977 = vpop.permute.xlu0 %976
      %978 = vrot.lane.b32.xlu0 %v907, 4
      %v979 = vpop.permute.xlu0 %978
      %980 = vrot.lane.b32.xlu0 %v910, 4
      %v981 = vpop.permute.xlu0 %980
      %982 = vrot.lane.b32.xlu0 %v912, 4
      %v983 = vpop.permute.xlu0 %982
      %984 = vrot.lane.b32.xlu0 %v915, 4
      %v985 = vpop.permute.xlu0 %984
      %986 = vrot.lane.b32.xlu0 %v917, 4
      %v987 = vpop.permute.xlu0 %986
      %988 = vrot.lane.b32.xlu0 %v920, 4
      %v989 = vpop.permute.xlu0 %988
      %990 = vrot.lane.b32.xlu0 %v922, 4
      %v991 = vpop.permute.xlu0 %990
      %992 = vrot.lane.b32.xlu0 %v925, 4
      %v993 = vpop.permute.xlu0 %992
      %994 = vrot.lane.b32.xlu0 %v927, 4
      %v995 = vpop.permute.xlu0 %994
      %996 = vrot.lane.b32.xlu0 %v930, 4
      %v997 = vpop.permute.xlu0 %996
      %998 = vrot.lane.b32.xlu0 %v932, 4
      %v999 = vpop.permute.xlu0 %998
      %1000 = vrot.lane.b32.xlu0 %v935, 4
      %v1001 = vpop.permute.xlu0 %1000
      %1002 = vrot.lane.b32.xlu0 %v937, 4
      %v1003 = vpop.permute.xlu0 %1002
      %1004 = vrot.lane.b32.xlu0 %v940, 4
      %v1005 = vpop.permute.xlu0 %1004
      %1006 = vrot.lane.b32.xlu0 %v942, 4
      %v1007 = vpop.permute.xlu0 %1006
      %1008 = vrot.lane.b32.xlu0 %v945, 4
      %v1009 = vpop.permute.xlu0 %1008
      %1010 = vrot.lane.b32.xlu0 %v947, 4
      %v1011 = vpop.permute.xlu0 %1010
      %v1044 = vrot.slane %v772, 2
      %v1045 = vrot.slane %v773, 2
      %v1046 = vsel %vm510, %v1044, %v1045
      %v1047 = vrot.slane %v774, 2
      %v1048 = vsel %vm510, %v1045, %v1047
      %v1049 = vrot.slane %v775, 2
      %v1050 = vrot.slane %v776, 2
      %v1051 = vsel %vm510, %v1049, %v1050
      %v1052 = vrot.slane %v777, 2
      %v1053 = vsel %vm510, %v1050, %v1052
      %v1054 = vrot.slane %v778, 2
      %v1055 = vrot.slane %v779, 2
      %v1056 = vsel %vm510, %v1054, %v1055
      %v1057 = vrot.slane %v780, 2
      %v1058 = vsel %vm510, %v1055, %v1057
      %v1059 = vrot.slane %v781, 2
      %v1060 = vrot.slane %v782, 2
      %v1061 = vsel %vm510, %v1059, %v1060
      %v1062 = vrot.slane %v783, 2
      %v1063 = vsel %vm510, %v1060, %v1062
      %v1064 = vrot.slane %v784, 2
      %v1065 = vrot.slane %v785, 2
      %v1066 = vsel %vm510, %v1064, %v1065
      %v1067 = vrot.slane %v786, 2
      %v1068 = vsel %vm510, %v1065, %v1067
      %v1069 = vrot.slane %v787, 2
      %v1070 = vrot.slane %v788, 2
      %v1071 = vsel %vm510, %v1069, %v1070
      %v1072 = vrot.slane %v789, 2
      %v1073 = vsel %vm510, %v1070, %v1072
      %v1074 = vrot.slane %v790, 2
      %v1075 = vrot.slane %v791, 2
      %v1076 = vsel %vm510, %v1074, %v1075
      %v1077 = vrot.slane %v792, 2
      %v1078 = vsel %vm510, %v1075, %v1077
      %v1079 = vrot.slane %v793, 2
      %v1080 = vrot.slane %v794, 2
      %v1081 = vsel %vm510, %v1079, %v1080
      %v1082 = vrot.slane %v795, 2
      %v1083 = vsel %vm510, %v1080, %v1082
      %v1084 = vrot.slane %v796, 2
      %v1085 = vrot.slane %v797, 2
      %v1086 = vsel %vm510, %v1084, %v1085
      %v1087 = vrot.slane %v798, 2
      %v1088 = vsel %vm510, %v1085, %v1087
      %v1089 = vrot.slane %v799, 2
      %v1090 = vrot.slane %v800, 2
      %v1091 = vsel %vm510, %v1089, %v1090
      %v1092 = vrot.slane %v801, 2
      %v1093 = vsel %vm510, %v1090, %v1092
      %v1094 = vrot.slane %v802, 2
      %v1095 = vrot.slane %v803, 2
      %v1096 = vsel %vm510, %v1094, %v1095
      %v1097 = vrot.slane %v804, 2
      %v1098 = vsel %vm510, %v1095, %v1097
      %v1099 = vrot.slane %v805, 2
      %v1100 = vrot.slane %v806, 2
      %v1101 = vsel %vm510, %v1099, %v1100
      %v1102 = vrot.slane %v807, 2
      %v1103 = vsel %vm510, %v1100, %v1102
      %v1104 = vrot.slane %v808, 2
      %v1105 = vrot.slane %v809, 2
      %v1106 = vsel %vm510, %v1104, %v1105
      %v1107 = vrot.slane %v810, 2
      %v1108 = vsel %vm510, %v1105, %v1107
      %v1109 = vrot.slane %v811, 2
      %v1110 = vrot.slane %v812, 2
      %v1111 = vsel %vm510, %v1109, %v1110
      %v1112 = vrot.slane %v813, 2
      %v1113 = vsel %vm510, %v1110, %v1112
      %v1114 = vrot.slane %v814, 2
      %v1115 = vrot.slane %v815, 2
      %v1116 = vsel %vm510, %v1114, %v1115
      %v1117 = vrot.slane %v816, 2
      %v1118 = vsel %vm510, %v1115, %v1117
      %v1119 = vrot.slane %v817, 2
      %v1120 = vrot.slane %v818, 2
      %v1121 = vsel %vm510, %v1119, %v1120
      %v1122 = vrot.slane %v819, 2
      %v1123 = vsel %vm510, %v1120, %v1122
      %1124 = vrot.lane.b32.xlu0 %v1046, 8
      %v1125 = vpop.permute.xlu0 %1124
      %1126 = vrot.lane.b32.xlu0 %v1048, 8
      %v1127 = vpop.permute.xlu0 %1126
      %1128 = vrot.lane.b32.xlu0 %v1051, 8
      %v1129 = vpop.permute.xlu0 %1128
      %1130 = vrot.lane.b32.xlu0 %v1053, 8
      %v1131 = vpop.permute.xlu0 %1130
      %1132 = vrot.lane.b32.xlu0 %v1056, 8
      %v1133 = vpop.permute.xlu0 %1132
      %1134 = vrot.lane.b32.xlu0 %v1058, 8
      %v1135 = vpop.permute.xlu0 %1134
      %1136 = vrot.lane.b32.xlu0 %v1061, 8
      %v1137 = vpop.permute.xlu0 %1136
      %1138 = vrot.lane.b32.xlu0 %v1063, 8
      %v1139 = vpop.permute.xlu0 %1138
      %1140 = vrot.lane.b32.xlu0 %v1066, 8
      %v1141 = vpop.permute.xlu0 %1140
      %1142 = vrot.lane.b32.xlu0 %v1068, 8
      %v1143 = vpop.permute.xlu0 %1142
      %1144 = vrot.lane.b32.xlu0 %v1071, 8
      %v1145 = vpop.permute.xlu0 %1144
      %1146 = vrot.lane.b32.xlu0 %v1073, 8
      %v1147 = vpop.permute.xlu0 %1146
      %1148 = vrot.lane.b32.xlu0 %v1076, 8
      %v1149 = vpop.permute.xlu0 %1148
      %1150 = vrot.lane.b32.xlu0 %v1078, 8
      %v1151 = vpop.permute.xlu0 %1150
      %1152 = vrot.lane.b32.xlu0 %v1081, 8
      %v1153 = vpop.permute.xlu0 %1152
      %1154 = vrot.lane.b32.xlu0 %v1083, 8
      %v1155 = vpop.permute.xlu0 %1154
      %1156 = vrot.lane.b32.xlu0 %v1086, 8
      %v1157 = vpop.permute.xlu0 %1156
      %1158 = vrot.lane.b32.xlu0 %v1088, 8
      %v1159 = vpop.permute.xlu0 %1158
      %1160 = vrot.lane.b32.xlu0 %v1091, 8
      %v1161 = vpop.permute.xlu0 %1160
      %1162 = vrot.lane.b32.xlu0 %v1093, 8
      %v1163 = vpop.permute.xlu0 %1162
      %1164 = vrot.lane.b32.xlu0 %v1096, 8
      %v1165 = vpop.permute.xlu0 %1164
      %1166 = vrot.lane.b32.xlu0 %v1098, 8
      %v1167 = vpop.permute.xlu0 %1166
      %1168 = vrot.lane.b32.xlu0 %v1101, 8
      %v1169 = vpop.permute.xlu0 %1168
      %1170 = vrot.lane.b32.xlu0 %v1103, 8
      %v1171 = vpop.permute.xlu0 %1170
      %1172 = vrot.lane.b32.xlu0 %v1106, 8
      %v1173 = vpop.permute.xlu0 %1172
      %1174 = vrot.lane.b32.xlu0 %v1108, 8
      %v1175 = vpop.permute.xlu0 %1174
      %1176 = vrot.lane.b32.xlu0 %v1111, 8
      %v1177 = vpop.permute.xlu0 %1176
      %1178 = vrot.lane.b32.xlu0 %v1113, 8
      %v1179 = vpop.permute.xlu0 %1178
      %1180 = vrot.lane.b32.xlu0 %v1116, 8
      %v1181 = vpop.permute.xlu0 %1180
      %1182 = vrot.lane.b32.xlu0 %v1118, 8
      %v1183 = vpop.permute.xlu0 %1182
      %1184 = vrot.lane.b32.xlu0 %v1121, 8
      %v1185 = vpop.permute.xlu0 %1184
      %1186 = vrot.lane.b32.xlu0 %v1123, 8
      %v1187 = vpop.permute.xlu0 %1186
      %v1220 = vsel %vm687, %v772, %v949
      %v1221 = vsel %vm687, %v773, %v951
      %v1222 = vsel %vm687, %v775, %v953
      %v1223 = vsel %vm687, %v776, %v955
      %v1224 = vsel %vm687, %v778, %v957
      %v1225 = vsel %vm687, %v779, %v959
      %v1226 = vsel %vm687, %v781, %v961
      %v1227 = vsel %vm687, %v782, %v963
      %v1228 = vsel %vm687, %v784, %v965
      %v1229 = vsel %vm687, %v785, %v967
      %v1230 = vsel %vm687, %v787, %v969
      %v1231 = vsel %vm687, %v788, %v971
      %v1232 = vsel %vm687, %v790, %v973
      %v1233 = vsel %vm687, %v791, %v975
      %v1234 = vsel %vm687, %v793, %v977
      %v1235 = vsel %vm687, %v794, %v979
      %v1236 = vsel %vm687, %v796, %v981
      %v1237 = vsel %vm687, %v797, %v983
      %v1238 = vsel %vm687, %v799, %v985
      %v1239 = vsel %vm687, %v800, %v987
      %v1240 = vsel %vm687, %v802, %v989
      %v1241 = vsel %vm687, %v803, %v991
      %v1242 = vsel %vm687, %v805, %v993
      %v1243 = vsel %vm687, %v806, %v995
      %v1244 = vsel %vm687, %v808, %v997
      %v1245 = vsel %vm687, %v809, %v999
      %v1246 = vsel %vm687, %v811, %v1001
      %v1247 = vsel %vm687, %v812, %v1003
      %v1248 = vsel %vm687, %v814, %v1005
      %v1249 = vsel %vm687, %v815, %v1007
      %v1250 = vsel %vm687, %v817, %v1009
      %v1251 = vsel %vm687, %v818, %v1011
      %v1252 = vsel %vm720, %v1220, %v1125
      %v1253 = vsel %vm720, %v1221, %v1127
      %v1254 = vsel %vm720, %v1222, %v1129
      %v1255 = vsel %vm720, %v1223, %v1131
      %v1256 = vsel %vm720, %v1224, %v1133
      %v1257 = vsel %vm720, %v1225, %v1135
      %v1258 = vsel %vm720, %v1226, %v1137
      %v1259 = vsel %vm720, %v1227, %v1139
      %v1260 = vsel %vm720, %v1228, %v1141
      %v1261 = vsel %vm720, %v1229, %v1143
      %v1262 = vsel %vm720, %v1230, %v1145
      %v1263 = vsel %vm720, %v1231, %v1147
      %v1264 = vsel %vm720, %v1232, %v1149
      %v1265 = vsel %vm720, %v1233, %v1151
      %v1266 = vsel %vm720, %v1234, %v1153
      %v1267 = vsel %vm720, %v1235, %v1155
      %v1268 = vsel %vm720, %v1236, %v1157
      %v1269 = vsel %vm720, %v1237, %v1159
      %v1270 = vsel %vm720, %v1238, %v1161
      %v1271 = vsel %vm720, %v1239, %v1163
      %v1272 = vsel %vm720, %v1240, %v1165
      %v1273 = vsel %vm720, %v1241, %v1167
      %v1274 = vsel %vm720, %v1242, %v1169
      %v1275 = vsel %vm720, %v1243, %v1171
      %v1276 = vsel %vm720, %v1244, %v1173
      %v1277 = vsel %vm720, %v1245, %v1175
      %v1278 = vsel %vm720, %v1246, %v1177
      %v1279 = vsel %vm720, %v1247, %v1179
      %v1280 = vsel %vm720, %v1248, %v1181
      %v1281 = vsel %vm720, %v1249, %v1183
      %v1282 = vsel %vm720, %v1250, %v1185
      %v1283 = vsel %vm720, %v1251, %v1187
      %v1284 = vpack.c.bf16 %v1253, %v1252
      %v1285 = vpack.c.bf16 %v1255, %v1254
      %v1286 = vpack.c.bf16 %v1257, %v1256
      %v1287 = vpack.c.bf16 %v1259, %v1258
      %v1288 = vpack.c.bf16 %v1261, %v1260
      %v1289 = vpack.c.bf16 %v1263, %v1262
      %v1290 = vpack.c.bf16 %v1265, %v1264
      %v1291 = vpack.c.bf16 %v1267, %v1266
      %v1292 = vpack.c.bf16 %v1269, %v1268
      %v1293 = vpack.c.bf16 %v1271, %v1270
      %v1294 = vpack.c.bf16 %v1273, %v1272
      %v1295 = vpack.c.bf16 %v1275, %v1274
      %v1296 = vpack.c.bf16 %v1277, %v1276
      %v1297 = vpack.c.bf16 %v1279, %v1278
      %v1298 = vpack.c.bf16 %v1281, %v1280
      %v1299 = vpack.c.bf16 %v1283, %v1282
      %s1300 = scalar_lea.vmem %s1, 8
      %v1301 = vld [vmem:[%s1300] sm:$0xf]
      %v1302 = vld [vmem:[%s1300 + $0x4] sm:$0x3]
      %v1305 = vunpack.c.l.b16 %v1301
      %v1306 = vunpack.c.l.b16 %v1302
      %v1307 = vpack.c.b16 %v1306, %v1305
      %vm1308 = vcmask 97280
      %v1310 = vsel %vm1308, %v1284, 0
      %v1313 = vsel %vm1308, %v1285, 0
      %v1316 = vsel %vm1308, %v1286, 0
      %v1319 = vsel %vm1308, %v1287, 0
      %v1322 = vsel %vm1308, %v1288, 0
      %v1325 = vsel %vm1308, %v1289, 0
      %v1328 = vsel %vm1308, %v1290, 0
      %v1331 = vsel %vm1308, %v1291, 0
      %v1334 = vsel %vm1308, %v1292, 0
      %v1337 = vsel %vm1308, %v1293, 0
      %v1340 = vsel %vm1308, %v1294, 0
      %v1343 = vsel %vm1308, %v1295, 0
      %v1346 = vsel %vm1308, %v1296, 0
      %v1349 = vsel %vm1308, %v1297, 0
      %v1352 = vsel %vm1308, %v1298, 0
      %v1355 = vsel %vm1308, %v1299, 0
      %v1358 = vsel %vm510, %v1307, 0
      %1360 = vmatprep.subr.bf16.mxu0 0
      %1361 = vmatpush1.bf16.msra.mxu0 %v1358
      %1362 = vmatprep.subr.bf16.mxu0 0
      %1363 = vmatpush1.bf16.msra.mxu0 0
      %1364 = vmatprep.subr.bf16.mxu0 0
      %1365 = vmatpush1.bf16.msra.mxu0 0
      %1366 = vmatprep.subr.bf16.mxu0 0
      %1367 = vmatpush1.bf16.msra.mxu0 0
      %1368 = vmatprep.subr.bf16.mxu0 0
      %1369 = vmatpush1.bf16.msra.mxu0 0
      %1370 = vmatprep.subr.bf16.mxu0 0
      %1371 = vmatpush1.bf16.msra.mxu0 0
      %1372 = vmatprep.subr.bf16.mxu0 0
      %1373 = vmatpush1.bf16.msra.mxu0 0
      %1374 = vmatprep.subr.bf16.mxu0 0
      %1375 = vmatpush1.bf16.msra.mxu0 0
      %1376 = vmatprep.subr.bf16.mxu0 0
      %1377 = vmatpush1.bf16.msra.mxu0 0
      %1378 = vmatprep.subr.bf16.mxu0 0
      %1379 = vmatpush1.bf16.msra.mxu0 0
      %1380 = vmatprep.subr.bf16.mxu0 0
      %1381 = vmatpush1.bf16.msra.mxu0 0
      %1382 = vmatprep.subr.bf16.mxu0 0
      %1383 = vmatpush1.bf16.msra.mxu0 0
      %1384 = vmatprep.subr.bf16.mxu0 0
      %1385 = vmatpush1.bf16.msra.mxu0 0
      %1386 = vmatprep.subr.bf16.mxu0 0
      %1387 = vmatpush1.bf16.msra.mxu0 0
      %1388 = vmatprep.subr.bf16.mxu0 0
      %1389 = vmatpush1.bf16.msra.mxu0 0
      %1390 = vmatprep.subr.bf16.mxu0 0
      %1391 = vmatpush1.bf16.msra.mxu0 0
      %1392 = vmatprep.mubr.bf16.mxu0 0
      %1393 = vmatmul.mubr.bf16.gmra.mrb[0].mxu0 %v1310
      %v1394 = vpop.f32.mrb[0].mxu0
      %v1395 = vadd.f32 0.0, %v1394
      %v1396 = vpop.f32.mrb[0].mxu0
      %v1397 = vpop.f32.mrb[0].mxu0
      %v1398 = vadd.f32 0.0, %v1397
      %v1399 = vpop.f32.mrb[0].mxu0
      %1400 = vmatprep.mubr.bf16.mxu0 0
      %1401 = vmatmul.mubr.bf16.gmra.mrb[0].mxu0 %v1313
      %v1402 = vpop.f32.mrb[0].mxu0
      %v1403 = vadd.f32 0.0, %v1402
      %v1404 = vpop.f32.mrb[0].mxu0
      %v1405 = vpop.f32.mrb[0].mxu0
      %v1406 = vadd.f32 0.0, %v1405
      %v1407 = vpop.f32.mrb[0].mxu0
      %1408 = vmatprep.mubr.bf16.mxu0 0
      %1409 = vmatmul.mubr.bf16.gmra.mrb[0].mxu0 %v1316
      %v1410 = vpop.f32.mrb[0].mxu0
      %v1411 = vadd.f32 0.0, %v1410
      %v1412 = vpop.f32.mrb[0].mxu0
      %v1413 = vpop.f32.mrb[0].mxu0
      %v1414 = vadd.f32 0.0, %v1413
      %v1415 = vpop.f32.mrb[0].mxu0
      %1416 = vmatprep.mubr.bf16.mxu0 0
      %1417 = vmatmul.mubr.bf16.gmra.mrb[0].mxu0 %v1319
      %v1418 = vpop.f32.mrb[0].mxu0
      %v1419 = vadd.f32 0.0, %v1418
      %v1420 = vpop.f32.mrb[0].mxu0
      %v1421 = vpop.f32.mrb[0].mxu0
      %v1422 = vadd.f32 0.0, %v1421
      %v1423 = vpop.f32.mrb[0].mxu0
      %1424 = vmatprep.mubr.bf16.mxu0 0
      %1425 = vmatmul.mubr.bf16.gmra.mrb[0].mxu0 %v1322
      %v1426 = vpop.f32.mrb[0].mxu0
      %v1427 = vadd.f32 0.0, %v1426
      %v1428 = vpop.f32.mrb[0].mxu0
      %v1429 = vpop.f32.mrb[0].mxu0
      %v1430 = vadd.f32 0.0, %v1429
      %v1431 = vpop.f32.mrb[0].mxu0
      %1432 = vmatprep.mubr.bf16.mxu0 0
      %1433 = vmatmul.mubr.bf16.gmra.mrb[0].mxu0 %v1325
      %v1434 = vpop.f32.mrb[0].mxu0
      %v1435 = vadd.f32 0.0, %v1434
      %v1436 = vpop.f32.mrb[0].mxu0
      %v1437 = vpop.f32.mrb[0].mxu0
      %v1438 = vadd.f32 0.0, %v1437
      %v1439 = vpop.f32.mrb[0].mxu0
      %1440 = vmatprep.mubr.bf16.mxu0 0
      %1441 = vmatmul.mubr.bf16.gmra.mrb[0].mxu0 %v1328
      %v1442 = vpop.f32.mrb[0].mxu0
      %v1443 = vadd.f32 0.0, %v1442
      %v1444 = vpop.f32.mrb[0].mxu0
      %v1445 = vpop.f32.mrb[0].mxu0
      %v1446 = vadd.f32 0.0, %v1445
      %v1447 = vpop.f32.mrb[0].mxu0
      %1448 = vmatprep.mubr.bf16.mxu0 0
      %1449 = vmatmul.mubr.bf16.gmra.mrb[0].mxu0 %v1331
      %v1450 = vpop.f32.mrb[0].mxu0
      %v1451 = vadd.f32 0.0, %v1450
      %v1452 = vpop.f32.mrb[0].mxu0
      %v1453 = vpop.f32.mrb[0].mxu0
      %v1454 = vadd.f32 0.0, %v1453
      %v1455 = vpop.f32.mrb[0].mxu0
      %1456 = vmatprep.mubr.bf16.mxu0 0
      %1457 = vmatmul.mubr.bf16.gmra.mrb[0].mxu0 %v1334
      %v1458 = vpop.f32.mrb[0].mxu0
      %v1459 = vadd.f32 0.0, %v1458
      %v1460 = vpop.f32.mrb[0].mxu0
      %v1461 = vpop.f32.mrb[0].mxu0
      %v1462 = vadd.f32 0.0, %v1461
      %v1463 = vpop.f32.mrb[0].mxu0
      %1464 = vmatprep.mubr.bf16.mxu0 0
      %1465 = vmatmul.mubr.bf16.gmra.mrb[0].mxu0 %v1337
      %v1466 = vpop.f32.mrb[0].mxu0
      %v1467 = vadd.f32 0.0, %v1466
      %v1468 = vpop.f32.mrb[0].mxu0
      %v1469 = vpop.f32.mrb[0].mxu0
      %v1470 = vadd.f32 0.0, %v1469
      %v1471 = vpop.f32.mrb[0].mxu0
      %1472 = vmatprep.mubr.bf16.mxu0 0
      %1473 = vmatmul.mubr.bf16.gmra.mrb[0].mxu0 %v1340
      %v1474 = vpop.f32.mrb[0].mxu0
      %v1475 = vadd.f32 0.0, %v1474
      %v1476 = vpop.f32.mrb[0].mxu0
      %v1477 = vpop.f32.mrb[0].mxu0
      %v1478 = vadd.f32 0.0, %v1477
      %v1479 = vpop.f32.mrb[0].mxu0
      %1480 = vmatprep.mubr.bf16.mxu0 0
      %1481 = vmatmul.mubr.bf16.gmra.mrb[0].mxu0 %v1343
      %v1482 = vpop.f32.mrb[0].mxu0
      %v1483 = vadd.f32 0.0, %v1482
      %v1484 = vpop.f32.mrb[0].mxu0
      %v1485 = vpop.f32.mrb[0].mxu0
      %v1486 = vadd.f32 0.0, %v1485
      %v1487 = vpop.f32.mrb[0].mxu0
      %1488 = vmatprep.mubr.bf16.mxu0 0
      %1489 = vmatmul.mubr.bf16.gmra.mrb[0].mxu0 %v1346
      %v1490 = vpop.f32.mrb[0].mxu0
      %v1491 = vadd.f32 0.0, %v1490
      %v1492 = vpop.f32.mrb[0].mxu0
      %v1493 = vpop.f32.mrb[0].mxu0
      %v1494 = vadd.f32 0.0, %v1493
      %v1495 = vpop.f32.mrb[0].mxu0
      %1496 = vmatprep.mubr.bf16.mxu0 0
      %1497 = vmatmul.mubr.bf16.gmra.mrb[0].mxu0 %v1349
      %v1498 = vpop.f32.mrb[0].mxu0
      %v1499 = vadd.f32 0.0, %v1498
      %v1500 = vpop.f32.mrb[0].mxu0
      %v1501 = vpop.f32.mrb[0].mxu0
      %v1502 = vadd.f32 0.0, %v1501
      %v1503 = vpop.f32.mrb[0].mxu0
      %1504 = vmatprep.mubr.bf16.mxu0 0
      %1505 = vmatmul.mubr.bf16.gmra.mrb[0].mxu0 %v1352
      %v1506 = vpop.f32.mrb[0].mxu0
      %v1507 = vadd.f32 0.0, %v1506
      %v1508 = vpop.f32.mrb[0].mxu0
      %v1509 = vpop.f32.mrb[0].mxu0
      %v1510 = vadd.f32 0.0, %v1509
      %v1511 = vpop.f32.mrb[0].mxu0
      %1512 = vmatprep.mubr.bf16.mxu0 0
      %1513 = vmatmul.mubr.bf16.gmra.mrb[0].mxu0 %v1355
      %v1514 = vpop.f32.mrb[0].mxu0
      %v1515 = vadd.f32 0.0, %v1514
      %v1516 = vpop.f32.mrb[0].mxu0
      %v1517 = vpop.f32.mrb[0].mxu0
      %v1518 = vadd.f32 0.0, %v1517
      %v1519 = vpop.f32.mrb[0].mxu0
      %1520 = vdwg.mxu0
      %v1523 = vunpack.c.l.b16 %v769
      %v1524 = vunpack.c.l.b16 %v770
      %v1525 = vpack.c.b16 %v1524, %v1523
      %v1527 = vsel %vm1308, %v753, 0
      %v1530 = vsel %vm1308, %v754, 0
      %v1533 = vsel %vm1308, %v755, 0
      %v1536 = vsel %vm1308, %v756, 0
      %v1539 = vsel %vm1308, %v757, 0
      %v1542 = vsel %vm1308, %v758, 0
      %v1545 = vsel %vm1308, %v759, 0
      %v1548 = vsel %vm1308, %v760, 0
      %v1551 = vsel %vm1308, %v761, 0
      %v1554 = vsel %vm1308, %v762, 0
      %v1557 = vsel %vm1308, %v763, 0
      %v1560 = vsel %vm1308, %v764, 0
      %v1563 = vsel %vm1308, %v765, 0
      %v1566 = vsel %vm1308, %v766, 0
      %v1569 = vsel %vm1308, %v767, 0
      %v1572 = vsel %vm1308, %v768, 0
      %v1575 = vsel %vm510, %v1525, 0
      %1577 = vmatprep.subr.bf16.mxu0 0
      %1578 = vmatpush1.bf16.msra.mxu0 %v1575
      %1579 = vmatprep.subr.bf16.mxu0 0
      %1580 = vmatpush1.bf16.msra.mxu0 0
      %1581 = vmatprep.subr.bf16.mxu0 0
      %1582 = vmatpush1.bf16.msra.mxu0 0
      %1583 = vmatprep.subr.bf16.mxu0 0
      %1584 = vmatpush1.bf16.msra.mxu0 0
      %1585 = vmatprep.subr.bf16.mxu0 0
      %1586 = vmatpush1.bf16.msra.mxu0 0
      %1587 = vmatprep.subr.bf16.mxu0 0
      %1588 = vmatpush1.bf16.msra.mxu0 0
      %1589 = vmatprep.subr.bf16.mxu0 0
      %1590 = vmatpush1.bf16.msra.mxu0 0
      %1591 = vmatprep.subr.bf16.mxu0 0
      %1592 = vmatpush1.bf16.msra.mxu0 0
      %1593 = vmatprep.subr.bf16.mxu0 0
      %1594 = vmatpush1.bf16.msra.mxu0 0
      %1595 = vmatprep.subr.bf16.mxu0 0
      %1596 = vmatpush1.bf16.msra.mxu0 0
      %1597 = vmatprep.subr.bf16.mxu0 0
      %1598 = vmatpush1.bf16.msra.mxu0 0
      %1599 = vmatprep.subr.bf16.mxu0 0
      %1600 = vmatpush1.bf16.msra.mxu0 0
      %1601 = vmatprep.subr.bf16.mxu0 0
      %1602 = vmatpush1.bf16.msra.mxu0 0
      %1603 = vmatprep.subr.bf16.mxu0 0
      %1604 = vmatpush1.bf16.msra.mxu0 0
      %1605 = vmatprep.subr.bf16.mxu0 0
      %1606 = vmatpush1.bf16.msra.mxu0 0
      %1607 = vmatprep.subr.bf16.mxu0 0
      %1608 = vmatpush1.bf16.msra.mxu0 0
      %1609 = vmatprep.mubr.bf16.mxu0 0
      %1610 = vmatmul.mubr.bf16.gmra.mrb[0].mxu0 %v1527
      %v1611 = vpop.f32.mrb[0].mxu0
      %v1612 = vadd.f32 %v1395, %v1611
      %v1613 = vpop.f32.mrb[0].mxu0
      %v1614 = vpop.f32.mrb[0].mxu0
      %v1615 = vadd.f32 %v1398, %v1614
      %v1616 = vpop.f32.mrb[0].mxu0
      %1617 = vmatprep.mubr.bf16.mxu0 0
      %1618 = vmatmul.mubr.bf16.gmra.mrb[0].mxu0 %v1530
      %v1619 = vpop.f32.mrb[0].mxu0
      %v1620 = vadd.f32 %v1403, %v1619
      %v1621 = vpop.f32.mrb[0].mxu0
      %v1622 = vpop.f32.mrb[0].mxu0
      %v1623 = vadd.f32 %v1406, %v1622
      %v1624 = vpop.f32.mrb[0].mxu0
      %1625 = vmatprep.mubr.bf16.mxu0 0
      %1626 = vmatmul.mubr.bf16.gmra.mrb[0].mxu0 %v1533
      %v1627 = vpop.f32.mrb[0].mxu0
      %v1628 = vadd.f32 %v1411, %v1627
      %v1629 = vpop.f32.mrb[0].mxu0
      %v1630 = vpop.f32.mrb[0].mxu0
      %v1631 = vadd.f32 %v1414, %v1630
      %v1632 = vpop.f32.mrb[0].mxu0
      %1633 = vmatprep.mubr.bf16.mxu0 0
      %1634 = vmatmul.mubr.bf16.gmra.mrb[0].mxu0 %v1536
      %v1635 = vpop.f32.mrb[0].mxu0
      %v1636 = vadd.f32 %v1419, %v1635
      %v1637 = vpop.f32.mrb[0].mxu0
      %v1638 = vpop.f32.mrb[0].mxu0
      %v1639 = vadd.f32 %v1422, %v1638
      %v1640 = vpop.f32.mrb[0].mxu0
      %1641 = vmatprep.mubr.bf16.mxu0 0
      %1642 = vmatmul.mubr.bf16.gmra.mrb[0].mxu0 %v1539
      %v1643 = vpop.f32.mrb[0].mxu0
      %v1644 = vadd.f32 %v1427, %v1643
      %v1645 = vpop.f32.mrb[0].mxu0
      %v1646 = vpop.f32.mrb[0].mxu0
      %v1647 = vadd.f32 %v1430, %v1646
      %v1648 = vpop.f32.mrb[0].mxu0
      %1649 = vmatprep.mubr.bf16.mxu0 0
      %1650 = vmatmul.mubr.bf16.gmra.mrb[0].mxu0 %v1542
      %v1651 = vpop.f32.mrb[0].mxu0
      %v1652 = vadd.f32 %v1435, %v1651
      %v1653 = vpop.f32.mrb[0].mxu0
      %v1654 = vpop.f32.mrb[0].mxu0
      %v1655 = vadd.f32 %v1438, %v1654
      %v1656 = vpop.f32.mrb[0].mxu0
      %1657 = vmatprep.mubr.bf16.mxu0 0
      %1658 = vmatmul.mubr.bf16.gmra.mrb[0].mxu0 %v1545
      %v1659 = vpop.f32.mrb[0].mxu0
      %v1660 = vadd.f32 %v1443, %v1659
      %v1661 = vpop.f32.mrb[0].mxu0
      %v1662 = vpop.f32.mrb[0].mxu0
      %v1663 = vadd.f32 %v1446, %v1662
      %v1664 = vpop.f32.mrb[0].mxu0
      %1665 = vmatprep.mubr.bf16.mxu0 0
      %1666 = vmatmul.mubr.bf16.gmra.mrb[0].mxu0 %v1548
      %v1667 = vpop.f32.mrb[0].mxu0
      %v1668 = vadd.f32 %v1451, %v1667
      %v1669 = vpop.f32.mrb[0].mxu0
      %v1670 = vpop.f32.mrb[0].mxu0
      %v1671 = vadd.f32 %v1454, %v1670
      %v1672 = vpop.f32.mrb[0].mxu0
      %1673 = vmatprep.mubr.bf16.mxu0 0
      %1674 = vmatmul.mubr.bf16.gmra.mrb[0].mxu0 %v1551
      %v1675 = vpop.f32.mrb[0].mxu0
      %v1676 = vadd.f32 %v1459, %v1675
      %v1677 = vpop.f32.mrb[0].mxu0
      %v1678 = vpop.f32.mrb[0].mxu0
      %v1679 = vadd.f32 %v1462, %v1678
      %v1680 = vpop.f32.mrb[0].mxu0
      %1681 = vmatprep.mubr.bf16.mxu0 0
      %1682 = vmatmul.mubr.bf16.gmra.mrb[0].mxu0 %v1554
      %v1683 = vpop.f32.mrb[0].mxu0
      %v1684 = vadd.f32 %v1467, %v1683
      %v1685 = vpop.f32.mrb[0].mxu0
      %v1686 = vpop.f32.mrb[0].mxu0
      %v1687 = vadd.f32 %v1470, %v1686
      %v1688 = vpop.f32.mrb[0].mxu0
      %1689 = vmatprep.mubr.bf16.mxu0 0
      %1690 = vmatmul.mubr.bf16.gmra.mrb[0].mxu0 %v1557
      %v1691 = vpop.f32.mrb[0].mxu0
      %v1692 = vadd.f32 %v1475, %v1691
      %v1693 = vpop.f32.mrb[0].mxu0
      %v1694 = vpop.f32.mrb[0].mxu0
      %v1695 = vadd.f32 %v1478, %v1694
      %v1696 = vpop.f32.mrb[0].mxu0
      %1697 = vmatprep.mubr.bf16.mxu0 0
      %1698 = vmatmul.mubr.bf16.gmra.mrb[0].mxu0 %v1560
      %v1699 = vpop.f32.mrb[0].mxu0
      %v1700 = vadd.f32 %v1483, %v1699
      %v1701 = vpop.f32.mrb[0].mxu0
      %v1702 = vpop.f32.mrb[0].mxu0
      %v1703 = vadd.f32 %v1486, %v1702
      %v1704 = vpop.f32.mrb[0].mxu0
      %1705 = vmatprep.mubr.bf16.mxu0 0
      %1706 = vmatmul.mubr.bf16.gmra.mrb[0].mxu0 %v1563
      %v1707 = vpop.f32.mrb[0].mxu0
      %v1708 = vadd.f32 %v1491, %v1707
      %v1709 = vpop.f32.mrb[0].mxu0
      %v1710 = vpop.f32.mrb[0].mxu0
      %v1711 = vadd.f32 %v1494, %v1710
      %v1712 = vpop.f32.mrb[0].mxu0
      %1713 = vmatprep.mubr.bf16.mxu0 0
      %1714 = vmatmul.mubr.bf16.gmra.mrb[0].mxu0 %v1566
      %v1715 = vpop.f32.mrb[0].mxu0
      %v1716 = vadd.f32 %v1499, %v1715
      %v1717 = vpop.f32.mrb[0].mxu0
      %v1718 = vpop.f32.mrb[0].mxu0
      %v1719 = vadd.f32 %v1502, %v1718
      %v1720 = vpop.f32.mrb[0].mxu0
      %1721 = vmatprep.mubr.bf16.mxu0 0
      %1722 = vmatmul.mubr.bf16.gmra.mrb[0].mxu0 %v1569
      %v1723 = vpop.f32.mrb[0].mxu0
      %v1724 = vadd.f32 %v1507, %v1723
      %v1725 = vpop.f32.mrb[0].mxu0
      %v1726 = vpop.f32.mrb[0].mxu0
      %v1727 = vadd.f32 %v1510, %v1726
      %v1728 = vpop.f32.mrb[0].mxu0
      %1729 = vmatprep.mubr.bf16.mxu0 0
      %1730 = vmatmul.mubr.bf16.gmra.mrb[0].mxu0 %v1572
      %v1731 = vpop.f32.mrb[0].mxu0
      %v1732 = vadd.f32 %v1515, %v1731
      %v1733 = vpop.f32.mrb[0].mxu0
      %v1734 = vpop.f32.mrb[0].mxu0
      %v1735 = vadd.f32 %v1518, %v1734
      %v1736 = vpop.f32.mrb[0].mxu0
      %1737 = vdwg.mxu0
      %s1738 = scalar_lea.vmem %s225, 48
      %v1739 = vld [vmem:[%s1738] sm:$0xff]
      %v1740 = vld [vmem:[%s1738 + $0x8] sm:$0xff]
      %v1741 = vld [vmem:[%s1738 + $0x10] sm:$0x3]
      %v1742 = vld [vmem:[%s1738 + $0x18] sm:$0xff]
      %v1743 = vld [vmem:[%s1738 + $0x20] sm:$0xff]
      %v1744 = vld [vmem:[%s1738 + $0x28] sm:$0x3]
      %v1745 = vld [vmem:[%s1738 + $0x30] sm:$0xff]
      %v1746 = vld [vmem:[%s1738 + $0x38] sm:$0xff]
      %v1747 = vld [vmem:[%s1738 + $0x40] sm:$0x3]
      %v1748 = vld [vmem:[%s1738 + $0x48] sm:$0xff]
      %v1749 = vld [vmem:[%s1738 + $0x50] sm:$0xff]
      %v1750 = vld [vmem:[%s1738 + $0x58] sm:$0x3]
      %v1751 = vld [vmem:[%s1738 + $0x60] sm:$0xff]
      %v1752 = vld [vmem:[%s1738 + $0x68] sm:$0xff]
      %v1753 = vld [vmem:[%s1738 + $0x70] sm:$0x3]
      %v1754 = vld [vmem:[%s1738 + $0x78] sm:$0xff]
      %v1755 = vld [vmem:[%s1738 + $0x80] sm:$0xff]
      %v1756 = vld [vmem:[%s1738 + $0x88] sm:$0x3]
      %v1757 = vld [vmem:[%s1738 + $0x90] sm:$0xff]
      %v1758 = vld [vmem:[%s1738 + $0x98] sm:$0xff]
      %v1759 = vld [vmem:[%s1738 + $0xa0] sm:$0x3]
      %v1760 = vld [vmem:[%s1738 + $0xa8] sm:$0xff]
      %v1761 = vld [vmem:[%s1738 + $0xb0] sm:$0xff]
      %v1762 = vld [vmem:[%s1738 + $0xb8] sm:$0x3]
      %v1763 = vld [vmem:[%s1738 + $0xc0] sm:$0xff]
      %v1764 = vld [vmem:[%s1738 + $0xc8] sm:$0xff]
      %v1765 = vld [vmem:[%s1738 + $0xd0] sm:$0x3]
      %v1766 = vld [vmem:[%s1738 + $0xd8] sm:$0xff]
      %v1767 = vld [vmem:[%s1738 + $0xe0] sm:$0xff]
      %v1768 = vld [vmem:[%s1738 + $0xe8] sm:$0x3]
      %v1769 = vld [vmem:[%s1738 + $0xf0] sm:$0xff]
      %v1770 = vld [vmem:[%s1738 + $0xf8] sm:$0xff]
      %v1771 = vld [vmem:[%s1738 + $0x100] sm:$0x3]
      %v1772 = vld [vmem:[%s1738 + $0x108] sm:$0xff]
      %v1773 = vld [vmem:[%s1738 + $0x110] sm:$0xff]
      %v1774 = vld [vmem:[%s1738 + $0x118] sm:$0x3]
      %v1775 = vld [vmem:[%s1738 + $0x120] sm:$0xff]
      %v1776 = vld [vmem:[%s1738 + $0x128] sm:$0xff]
      %v1777 = vld [vmem:[%s1738 + $0x130] sm:$0x3]
      %v1778 = vld [vmem:[%s1738 + $0x138] sm:$0xff]
      %v1779 = vld [vmem:[%s1738 + $0x140] sm:$0xff]
      %v1780 = vld [vmem:[%s1738 + $0x148] sm:$0x3]
      %v1781 = vld [vmem:[%s1738 + $0x150] sm:$0xff]
      %v1782 = vld [vmem:[%s1738 + $0x158] sm:$0xff]
      %v1783 = vld [vmem:[%s1738 + $0x160] sm:$0x3]
      %v1784 = vld [vmem:[%s1738 + $0x168] sm:$0xff]
      %v1785 = vld [vmem:[%s1738 + $0x170] sm:$0xff]
      %v1786 = vld [vmem:[%s1738 + $0x178] sm:$0x3]
      %v1835 = vrot.slane %v1739, 1
      %v1836 = vrot.slane %v1740, 1
      %v1837 = vsel %vm333, %v1835, %v1836
      %v1838 = vrot.slane %v1741, 1
      %v1839 = vsel %vm333, %v1836, %v1838
      %v1840 = vrot.slane %v1742, 1
      %v1841 = vrot.slane %v1743, 1
      %v1842 = vsel %vm333, %v1840, %v1841
      %v1843 = vrot.slane %v1744, 1
      %v1844 = vsel %vm333, %v1841, %v1843
      %v1845 = vrot.slane %v1745, 1
      %v1846 = vrot.slane %v1746, 1
      %v1847 = vsel %vm333, %v1845, %v1846
      %v1848 = vrot.slane %v1747, 1
      %v1849 = vsel %vm333, %v1846, %v1848
      %v1850 = vrot.slane %v1748, 1
      %v1851 = vrot.slane %v1749, 1
      %v1852 = vsel %vm333, %v1850, %v1851
      %v1853 = vrot.slane %v1750, 1
      %v1854 = vsel %vm333, %v1851, %v1853
      %v1855 = vrot.slane %v1751, 1
      %v1856 = vrot.slane %v1752, 1
      %v1857 = vsel %vm333, %v1855, %v1856
      %v1858 = vrot.slane %v1753, 1
      %v1859 = vsel %vm333, %v1856, %v1858
      %v1860 = vrot.slane %v1754, 1
      %v1861 = vrot.slane %v1755, 1
      %v1862 = vsel %vm333, %v1860, %v1861
      %v1863 = vrot.slane %v1756, 1
      %v1864 = vsel %vm333, %v1861, %v1863
      %v1865 = vrot.slane %v1757, 1
      %v1866 = vrot.slane %v1758, 1
      %v1867 = vsel %vm333, %v1865, %v1866
      %v1868 = vrot.slane %v1759, 1
      %v1869 = vsel %vm333, %v1866, %v1868
      %v1870 = vrot.slane %v1760, 1
      %v1871 = vrot.slane %v1761, 1
      %v1872 = vsel %vm333, %v1870, %v1871
      %v1873 = vrot.slane %v1762, 1
      %v1874 = vsel %vm333, %v1871, %v1873
      %v1875 = vrot.slane %v1763, 1
      %v1876 = vrot.slane %v1764, 1
      %v1877 = vsel %vm333, %v1875, %v1876
      %v1878 = vrot.slane %v1765, 1
      %v1879 = vsel %vm333, %v1876, %v1878
      %v1880 = vrot.slane %v1766, 1
      %v1881 = vrot.slane %v1767, 1
      %v1882 = vsel %vm333, %v1880, %v1881
      %v1883 = vrot.slane %v1768, 1
      %v1884 = vsel %vm333, %v1881, %v1883
      %v1885 = vrot.slane %v1769, 1
      %v1886 = vrot.slane %v1770, 1
      %v1887 = vsel %vm333, %v1885, %v1886
      %v1888 = vrot.slane %v1771, 1
      %v1889 = vsel %vm333, %v1886, %v1888
      %v1890 = vrot.slane %v1772, 1
      %v1891 = vrot.slane %v1773, 1
      %v1892 = vsel %vm333, %v1890, %v1891
      %v1893 = vrot.slane %v1774, 1
      %v1894 = vsel %vm333, %v1891, %v1893
      %v1895 = vrot.slane %v1775, 1
      %v1896 = vrot.slane %v1776, 1
      %v1897 = vsel %vm333, %v1895, %v1896
      %v1898 = vrot.slane %v1777, 1
      %v1899 = vsel %vm333, %v1896, %v1898
      %v1900 = vrot.slane %v1778, 1
      %v1901 = vrot.slane %v1779, 1
      %v1902 = vsel %vm333, %v1900, %v1901
      %v1903 = vrot.slane %v1780, 1
      %v1904 = vsel %vm333, %v1901, %v1903
      %v1905 = vrot.slane %v1781, 1
      %v1906 = vrot.slane %v1782, 1
      %v1907 = vsel %vm333, %v1905, %v1906
      %v1908 = vrot.slane %v1783, 1
      %v1909 = vsel %vm333, %v1906, %v1908
      %v1910 = vrot.slane %v1784, 1
      %v1911 = vrot.slane %v1785, 1
      %v1912 = vsel %vm333, %v1910, %v1911
      %v1913 = vrot.slane %v1786, 1
      %v1914 = vsel %vm333, %v1911, %v1913
      %1915 = vrot.lane.b32.xlu0 %v1837, 4
      %v1916 = vpop.permute.xlu0 %1915
      %1917 = vrot.lane.b32.xlu0 %v1839, 4
      %v1918 = vpop.permute.xlu0 %1917
      %1919 = vrot.lane.b32.xlu0 %v1842, 4
      %v1920 = vpop.permute.xlu0 %1919
      %1921 = vrot.lane.b32.xlu0 %v1844, 4
      %v1922 = vpop.permute.xlu0 %1921
      %1923 = vrot.lane.b32.xlu0 %v1847, 4
      %v1924 = vpop.permute.xlu0 %1923
      %1925 = vrot.lane.b32.xlu0 %v1849, 4
      %v1926 = vpop.permute.xlu0 %1925
      %1927 = vrot.lane.b32.xlu0 %v1852, 4
      %v1928 = vpop.permute.xlu0 %1927
      %1929 = vrot.lane.b32.xlu0 %v1854, 4
      %v1930 = vpop.permute.xlu0 %1929
      %1931 = vrot.lane.b32.xlu0 %v1857, 4
      %v1932 = vpop.permute.xlu0 %1931
      %1933 = vrot.lane.b32.xlu0 %v1859, 4
      %v1934 = vpop.permute.xlu0 %1933
      %1935 = vrot.lane.b32.xlu0 %v1862, 4
      %v1936 = vpop.permute.xlu0 %1935
      %1937 = vrot.lane.b32.xlu0 %v1864, 4
      %v1938 = vpop.permute.xlu0 %1937
      %1939 = vrot.lane.b32.xlu0 %v1867, 4
      %v1940 = vpop.permute.xlu0 %1939
      %1941 = vrot.lane.b32.xlu0 %v1869, 4
      %v1942 = vpop.permute.xlu0 %1941
      %1943 = vrot.lane.b32.xlu0 %v1872, 4
      %v1944 = vpop.permute.xlu0 %1943
      %1945 = vrot.lane.b32.xlu0 %v1874, 4
      %v1946 = vpop.permute.xlu0 %1945
      %1947 = vrot.lane.b32.xlu0 %v1877, 4
      %v1948 = vpop.permute.xlu0 %1947
      %1949 = vrot.lane.b32.xlu0 %v1879, 4
      %v1950 = vpop.permute.xlu0 %1949
      %1951 = vrot.lane.b32.xlu0 %v1882, 4
      %v1952 = vpop.permute.xlu0 %1951
      %1953 = vrot.lane.b32.xlu0 %v1884, 4
      %v1954 = vpop.permute.xlu0 %1953
      %1955 = vrot.lane.b32.xlu0 %v1887, 4
      %v1956 = vpop.permute.xlu0 %1955
      %1957 = vrot.lane.b32.xlu0 %v1889, 4
      %v1958 = vpop.permute.xlu0 %1957
      %1959 = vrot.lane.b32.xlu0 %v1892, 4
      %v1960 = vpop.permute.xlu0 %1959
      %1961 = vrot.lane.b32.xlu0 %v1894, 4
      %v1962 = vpop.permute.xlu0 %1961
      %1963 = vrot.lane.b32.xlu0 %v1897, 4
      %v1964 = vpop.permute.xlu0 %1963
      %1965 = vrot.lane.b32.xlu0 %v1899, 4
      %v1966 = vpop.permute.xlu0 %1965
      %1967 = vrot.lane.b32.xlu0 %v1902, 4
      %v1968 = vpop.permute.xlu0 %1967
      %1969 = vrot.lane.b32.xlu0 %v1904, 4
      %v1970 = vpop.permute.xlu0 %1969
      %1971 = vrot.lane.b32.xlu0 %v1907, 4
      %v1972 = vpop.permute.xlu0 %1971
      %1973 = vrot.lane.b32.xlu0 %v1909, 4
      %v1974 = vpop.permute.xlu0 %1973
      %1975 = vrot.lane.b32.xlu0 %v1912, 4
      %v1976 = vpop.permute.xlu0 %1975
      %1977 = vrot.lane.b32.xlu0 %v1914, 4
      %v1978 = vpop.permute.xlu0 %1977
      %v2011 = vrot.slane %v1739, 2
      %v2012 = vrot.slane %v1740, 2
      %v2013 = vsel %vm510, %v2011, %v2012
      %v2014 = vrot.slane %v1741, 2
      %v2015 = vsel %vm510, %v2012, %v2014
      %v2016 = vrot.slane %v1742, 2
      %v2017 = vrot.slane %v1743, 2
      %v2018 = vsel %vm510, %v2016, %v2017
      %v2019 = vrot.slane %v1744, 2
      %v2020 = vsel %vm510, %v2017, %v2019
      %v2021 = vrot.slane %v1745, 2
      %v2022 = vrot.slane %v1746, 2
      %v2023 = vsel %vm510, %v2021, %v2022
      %v2024 = vrot.slane %v1747, 2
      %v2025 = vsel %vm510, %v2022, %v2024
      %v2026 = vrot.slane %v1748, 2
      %v2027 = vrot.slane %v1749, 2
      %v2028 = vsel %vm510, %v2026, %v2027
      %v2029 = vrot.slane %v1750, 2
      %v2030 = vsel %vm510, %v2027, %v2029
      %v2031 = vrot.slane %v1751, 2
      %v2032 = vrot.slane %v1752, 2
      %v2033 = vsel %vm510, %v2031, %v2032
      %v2034 = vrot.slane %v1753, 2
      %v2035 = vsel %vm510, %v2032, %v2034
      %v2036 = vrot.slane %v1754, 2
      %v2037 = vrot.slane %v1755, 2
      %v2038 = vsel %vm510, %v2036, %v2037
      %v2039 = vrot.slane %v1756, 2
      %v2040 = vsel %vm510, %v2037, %v2039
      %v2041 = vrot.slane %v1757, 2
      %v2042 = vrot.slane %v1758, 2
      %v2043 = vsel %vm510, %v2041, %v2042
      %v2044 = vrot.slane %v1759, 2
      %v2045 = vsel %vm510, %v2042, %v2044
      %v2046 = vrot.slane %v1760, 2
      %v2047 = vrot.slane %v1761, 2
      %v2048 = vsel %vm510, %v2046, %v2047
      %v2049 = vrot.slane %v1762, 2
      %v2050 = vsel %vm510, %v2047, %v2049
      %v2051 = vrot.slane %v1763, 2
      %v2052 = vrot.slane %v1764, 2
      %v2053 = vsel %vm510, %v2051, %v2052
      %v2054 = vrot.slane %v1765, 2
      %v2055 = vsel %vm510, %v2052, %v2054
      %v2056 = vrot.slane %v1766, 2
      %v2057 = vrot.slane %v1767, 2
      %v2058 = vsel %vm510, %v2056, %v2057
      %v2059 = vrot.slane %v1768, 2
      %v2060 = vsel %vm510, %v2057, %v2059
      %v2061 = vrot.slane %v1769, 2
      %v2062 = vrot.slane %v1770, 2
      %v2063 = vsel %vm510, %v2061, %v2062
      %v2064 = vrot.slane %v1771, 2
      %v2065 = vsel %vm510, %v2062, %v2064
      %v2066 = vrot.slane %v1772, 2
      %v2067 = vrot.slane %v1773, 2
      %v2068 = vsel %vm510, %v2066, %v2067
      %v2069 = vrot.slane %v1774, 2
      %v2070 = vsel %vm510, %v2067, %v2069
      %v2071 = vrot.slane %v1775, 2
      %v2072 = vrot.slane %v1776, 2
      %v2073 = vsel %vm510, %v2071, %v2072
      %v2074 = vrot.slane %v1777, 2
      %v2075 = vsel %vm510, %v2072, %v2074
      %v2076 = vrot.slane %v1778, 2
      %v2077 = vrot.slane %v1779, 2
      %v2078 = vsel %vm510, %v2076, %v2077
      %v2079 = vrot.slane %v1780, 2
      %v2080 = vsel %vm510, %v2077, %v2079
      %v2081 = vrot.slane %v1781, 2
      %v2082 = vrot.slane %v1782, 2
      %v2083 = vsel %vm510, %v2081, %v2082
      %v2084 = vrot.slane %v1783, 2
      %v2085 = vsel %vm510, %v2082, %v2084
      %v2086 = vrot.slane %v1784, 2
      %v2087 = vrot.slane %v1785, 2
      %v2088 = vsel %vm510, %v2086, %v2087
      %v2089 = vrot.slane %v1786, 2
      %v2090 = vsel %vm510, %v2087, %v2089
      %2091 = vrot.lane.b32.xlu0 %v2013, 8
      %v2092 = vpop.permute.xlu0 %2091
      %2093 = vrot.lane.b32.xlu0 %v2015, 8
      %v2094 = vpop.permute.xlu0 %2093
      %2095 = vrot.lane.b32.xlu0 %v2018, 8
      %v2096 = vpop.permute.xlu0 %2095
      %2097 = vrot.lane.b32.xlu0 %v2020, 8
      %v2098 = vpop.permute.xlu0 %2097
      %2099 = vrot.lane.b32.xlu0 %v2023, 8
      %v2100 = vpop.permute.xlu0 %2099
      %2101 = vrot.lane.b32.xlu0 %v2025, 8
      %v2102 = vpop.permute.xlu0 %2101
      %2103 = vrot.lane.b32.xlu0 %v2028, 8
      %v2104 = vpop.permute.xlu0 %2103
      %2105 = vrot.lane.b32.xlu0 %v2030, 8
      %v2106 = vpop.permute.xlu0 %2105
      %2107 = vrot.lane.b32.xlu0 %v2033, 8
      %v2108 = vpop.permute.xlu0 %2107
      %2109 = vrot.lane.b32.xlu0 %v2035, 8
      %v2110 = vpop.permute.xlu0 %2109
      %2111 = vrot.lane.b32.xlu0 %v2038, 8
      %v2112 = vpop.permute.xlu0 %2111
      %2113 = vrot.lane.b32.xlu0 %v2040, 8
      %v2114 = vpop.permute.xlu0 %2113
      %2115 = vrot.lane.b32.xlu0 %v2043, 8
      %v2116 = vpop.permute.xlu0 %2115
      %2117 = vrot.lane.b32.xlu0 %v2045, 8
      %v2118 = vpop.permute.xlu0 %2117
      %2119 = vrot.lane.b32.xlu0 %v2048, 8
      %v2120 = vpop.permute.xlu0 %2119
      %2121 = vrot.lane.b32.xlu0 %v2050, 8
      %v2122 = vpop.permute.xlu0 %2121
      %2123 = vrot.lane.b32.xlu0 %v2053, 8
      %v2124 = vpop.permute.xlu0 %2123
      %2125 = vrot.lane.b32.xlu0 %v2055, 8
      %v2126 = vpop.permute.xlu0 %2125
      %2127 = vrot.lane.b32.xlu0 %v2058, 8
      %v2128 = vpop.permute.xlu0 %2127
      %2129 = vrot.lane.b32.xlu0 %v2060, 8
      %v2130 = vpop.permute.xlu0 %2129
      %2131 = vrot.lane.b32.xlu0 %v2063, 8
      %v2132 = vpop.permute.xlu0 %2131
      %2133 = vrot.lane.b32.xlu0 %v2065, 8
      %v2134 = vpop.permute.xlu0 %2133
      %2135 = vrot.lane.b32.xlu0 %v2068, 8
      %v2136 = vpop.permute.xlu0 %2135
      %2137 = vrot.lane.b32.xlu0 %v2070, 8
      %v2138 = vpop.permute.xlu0 %2137
      %2139 = vrot.lane.b32.xlu0 %v2073, 8
      %v2140 = vpop.permute.xlu0 %2139
      %2141 = vrot.lane.b32.xlu0 %v2075, 8
      %v2142 = vpop.permute.xlu0 %2141
      %2143 = vrot.lane.b32.xlu0 %v2078, 8
      %v2144 = vpop.permute.xlu0 %2143
      %2145 = vrot.lane.b32.xlu0 %v2080, 8
      %v2146 = vpop.permute.xlu0 %2145
      %2147 = vrot.lane.b32.xlu0 %v2083, 8
      %v2148 = vpop.permute.xlu0 %2147
      %2149 = vrot.lane.b32.xlu0 %v2085, 8
      %v2150 = vpop.permute.xlu0 %2149
      %2151 = vrot.lane.b32.xlu0 %v2088, 8
      %v2152 = vpop.permute.xlu0 %2151
      %2153 = vrot.lane.b32.xlu0 %v2090, 8
      %v2154 = vpop.permute.xlu0 %2153
      %v2187 = vsel %vm687, %v1739, %v1916
      %v2188 = vsel %vm687, %v1740, %v1918
      %v2189 = vsel %vm687, %v1742, %v1920
      %v2190 = vsel %vm687, %v1743, %v1922
      %v2191 = vsel %vm687, %v1745, %v1924
      %v2192 = vsel %vm687, %v1746, %v1926
      %v2193 = vsel %vm687, %v1748, %v1928
      %v2194 = vsel %vm687, %v1749, %v1930
      %v2195 = vsel %vm687, %v1751, %v1932
      %v2196 = vsel %vm687, %v1752, %v1934
      %v2197 = vsel %vm687, %v1754, %v1936
      %v2198 = vsel %vm687, %v1755, %v1938
      %v2199 = vsel %vm687, %v1757, %v1940
      %v2200 = vsel %vm687, %v1758, %v1942
      %v2201 = vsel %vm687, %v1760, %v1944
      %v2202 = vsel %vm687, %v1761, %v1946
      %v2203 = vsel %vm687, %v1763, %v1948
      %v2204 = vsel %vm687, %v1764, %v1950
      %v2205 = vsel %vm687, %v1766, %v1952
      %v2206 = vsel %vm687, %v1767, %v1954
      %v2207 = vsel %vm687, %v1769, %v1956
      %v2208 = vsel %vm687, %v1770, %v1958
      %v2209 = vsel %vm687, %v1772, %v1960
      %v2210 = vsel %vm687, %v1773, %v1962
      %v2211 = vsel %vm687, %v1775, %v1964
      %v2212 = vsel %vm687, %v1776, %v1966
      %v2213 = vsel %vm687, %v1778, %v1968
      %v2214 = vsel %vm687, %v1779, %v1970
      %v2215 = vsel %vm687, %v1781, %v1972
      %v2216 = vsel %vm687, %v1782, %v1974
      %v2217 = vsel %vm687, %v1784, %v1976
      %v2218 = vsel %vm687, %v1785, %v1978
      %v2219 = vsel %vm720, %v2187, %v2092
      %v2220 = vsel %vm720, %v2188, %v2094
      %v2221 = vsel %vm720, %v2189, %v2096
      %v2222 = vsel %vm720, %v2190, %v2098
      %v2223 = vsel %vm720, %v2191, %v2100
      %v2224 = vsel %vm720, %v2192, %v2102
      %v2225 = vsel %vm720, %v2193, %v2104
      %v2226 = vsel %vm720, %v2194, %v2106
      %v2227 = vsel %vm720, %v2195, %v2108
      %v2228 = vsel %vm720, %v2196, %v2110
      %v2229 = vsel %vm720, %v2197, %v2112
      %v2230 = vsel %vm720, %v2198, %v2114
      %v2231 = vsel %vm720, %v2199, %v2116
      %v2232 = vsel %vm720, %v2200, %v2118
      %v2233 = vsel %vm720, %v2201, %v2120
      %v2234 = vsel %vm720, %v2202, %v2122
      %v2235 = vsel %vm720, %v2203, %v2124
      %v2236 = vsel %vm720, %v2204, %v2126
      %v2237 = vsel %vm720, %v2205, %v2128
      %v2238 = vsel %vm720, %v2206, %v2130
      %v2239 = vsel %vm720, %v2207, %v2132
      %v2240 = vsel %vm720, %v2208, %v2134
      %v2241 = vsel %vm720, %v2209, %v2136
      %v2242 = vsel %vm720, %v2210, %v2138
      %v2243 = vsel %vm720, %v2211, %v2140
      %v2244 = vsel %vm720, %v2212, %v2142
      %v2245 = vsel %vm720, %v2213, %v2144
      %v2246 = vsel %vm720, %v2214, %v2146
      %v2247 = vsel %vm720, %v2215, %v2148
      %v2248 = vsel %vm720, %v2216, %v2150
      %v2249 = vsel %vm720, %v2217, %v2152
      %v2250 = vsel %vm720, %v2218, %v2154
      %v2251 = vpack.c.bf16 %v2220, %v2219
      %v2252 = vpack.c.bf16 %v2222, %v2221
      %v2253 = vpack.c.bf16 %v2224, %v2223
      %v2254 = vpack.c.bf16 %v2226, %v2225
      %v2255 = vpack.c.bf16 %v2228, %v2227
      %v2256 = vpack.c.bf16 %v2230, %v2229
      %v2257 = vpack.c.bf16 %v2232, %v2231
      %v2258 = vpack.c.bf16 %v2234, %v2233
      %v2259 = vpack.c.bf16 %v2236, %v2235
      %v2260 = vpack.c.bf16 %v2238, %v2237
      %v2261 = vpack.c.bf16 %v2240, %v2239
      %v2262 = vpack.c.bf16 %v2242, %v2241
      %v2263 = vpack.c.bf16 %v2244, %v2243
      %v2264 = vpack.c.bf16 %v2246, %v2245
      %v2265 = vpack.c.bf16 %v2248, %v2247
      %v2266 = vpack.c.bf16 %v2250, %v2249
      %s2267 = scalar_lea.vmem %s1, 16
      %v2268 = vld [vmem:[%s2267] sm:$0xf]
      %v2269 = vld [vmem:[%s2267 + $0x4] sm:$0x3]
      %v2272 = vunpack.c.l.b16 %v2268
      %v2273 = vunpack.c.l.b16 %v2269
      %v2274 = vpack.c.b16 %v2273, %v2272
      %v2276 = vsel %vm1308, %v2251, 0
      %v2279 = vsel %vm1308, %v2252, 0
      %v2282 = vsel %vm1308, %v2253, 0
      %v2285 = vsel %vm1308, %v2254, 0
      %v2288 = vsel %vm1308, %v2255, 0
      %v2291 = vsel %vm1308, %v2256, 0
      %v2294 = vsel %vm1308, %v2257, 0
      %v2297 = vsel %vm1308, %v2258, 0
      %v2300 = vsel %vm1308, %v2259, 0
      %v2303 = vsel %vm1308, %v2260, 0
      %v2306 = vsel %vm1308, %v2261, 0
      %v2309 = vsel %vm1308, %v2262, 0
      %v2312 = vsel %vm1308, %v2263, 0
      %v2315 = vsel %vm1308, %v2264, 0
      %v2318 = vsel %vm1308, %v2265, 0
      %v2321 = vsel %vm1308, %v2266, 0
      %v2324 = vsel %vm510, %v2274, 0
      %2326 = vmatprep.subr.bf16.mxu0 0
      %2327 = vmatpush1.bf16.msra.mxu0 %v2324
      %2328 = vmatprep.subr.bf16.mxu0 0
      %2329 = vmatpush1.bf16.msra.mxu0 0
      %2330 = vmatprep.subr.bf16.mxu0 0
      %2331 = vmatpush1.bf16.msra.mxu0 0
      %2332 = vmatprep.subr.bf16.mxu0 0
      %2333 = vmatpush1.bf16.msra.mxu0 0
      %2334 = vmatprep.subr.bf16.mxu0 0
      %2335 = vmatpush1.bf16.msra.mxu0 0
      %2336 = vmatprep.subr.bf16.mxu0 0
      %2337 = vmatpush1.bf16.msra.mxu0 0
      %2338 = vmatprep.subr.bf16.mxu0 0
      %2339 = vmatpush1.bf16.msra.mxu0 0
      %2340 = vmatprep.subr.bf16.mxu0 0
      %2341 = vmatpush1.bf16.msra.mxu0 0
      %2342 = vmatprep.subr.bf16.mxu0 0
      %2343 = vmatpush1.bf16.msra.mxu0 0
      %2344 = vmatprep.subr.bf16.mxu0 0
      %2345 = vmatpush1.bf16.msra.mxu0 0
      %2346 = vmatprep.subr.bf16.mxu0 0
      %2347 = vmatpush1.bf16.msra.mxu0 0
      %2348 = vmatprep.subr.bf16.mxu0 0
      %2349 = vmatpush1.bf16.msra.mxu0 0
      %2350 = vmatprep.subr.bf16.mxu0 0
      %2351 = vmatpush1.bf16.msra.mxu0 0
      %2352 = vmatprep.subr.bf16.mxu0 0
      %2353 = vmatpush1.bf16.msra.mxu0 0
      %2354 = vmatprep.subr.bf16.mxu0 0
      %2355 = vmatpush1.bf16.msra.mxu0 0
      %2356 = vmatprep.subr.bf16.mxu0 0
      %2357 = vmatpush1.bf16.msra.mxu0 0
      %2358 = vmatprep.mubr.bf16.mxu0 0
      %2359 = vmatmul.mubr.bf16.gmra.mrb[0].mxu0 %v2276
      %v2360 = vpop.f32.mrb[0].mxu0
      %v2361 = vadd.f32 0.0, %v2360
      %v2362 = vpop.f32.mrb[0].mxu0
      %v2363 = vpop.f32.mrb[0].mxu0
      %v2364 = vadd.f32 0.0, %v2363
      %v2365 = vpop.f32.mrb[0].mxu0
      %2366 = vmatprep.mubr.bf16.mxu0 0
      %2367 = vmatmul.mubr.bf16.gmra.mrb[0].mxu0 %v2279
      %v2368 = vpop.f32.mrb[0].mxu0
      %v2369 = vadd.f32 0.0, %v2368
      %v2370 = vpop.f32.mrb[0].mxu0
      %v2371 = vpop.f32.mrb[0].mxu0
      %v2372 = vadd.f32 0.0, %v2371
      %v2373 = vpop.f32.mrb[0].mxu0
      %2374 = vmatprep.mubr.bf16.mxu0 0
      %2375 = vmatmul.mubr.bf16.gmra.mrb[0].mxu0 %v2282
      %v2376 = vpop.f32.mrb[0].mxu0
      %v2377 = vadd.f32 0.0, %v2376
      %v2378 = vpop.f32.mrb[0].mxu0
      %v2379 = vpop.f32.mrb[0].mxu0
      %v2380 = vadd.f32 0.0, %v2379
      %v2381 = vpop.f32.mrb[0].mxu0
      %2382 = vmatprep.mubr.bf16.mxu0 0
      %2383 = vmatmul.mubr.bf16.gmra.mrb[0].mxu0 %v2285
      %v2384 = vpop.f32.mrb[0].mxu0
      %v2385 = vadd.f32 0.0, %v2384
      %v2386 = vpop.f32.mrb[0].mxu0
      %v2387 = vpop.f32.mrb[0].mxu0
      %v2388 = vadd.f32 0.0, %v2387
      %v2389 = vpop.f32.mrb[0].mxu0
      %2390 = vmatprep.mubr.bf16.mxu0 0
      %2391 = vmatmul.mubr.bf16.gmra.mrb[0].mxu0 %v2288
      %v2392 = vpop.f32.mrb[0].mxu0
      %v2393 = vadd.f32 0.0, %v2392
      %v2394 = vpop.f32.mrb[0].mxu0
      %v2395 = vpop.f32.mrb[0].mxu0
      %v2396 = vadd.f32 0.0, %v2395
      %v2397 = vpop.f32.mrb[0].mxu0
      %2398 = vmatprep.mubr.bf16.mxu0 0
      %2399 = vmatmul.mubr.bf16.gmra.mrb[0].mxu0 %v2291
      %v2400 = vpop.f32.mrb[0].mxu0
      %v2401 = vadd.f32 0.0, %v2400
      %v2402 = vpop.f32.mrb[0].mxu0
      %v2403 = vpop.f32.mrb[0].mxu0
      %v2404 = vadd.f32 0.0, %v2403
      %v2405 = vpop.f32.mrb[0].mxu0
      %2406 = vmatprep.mubr.bf16.mxu0 0
      %2407 = vmatmul.mubr.bf16.gmra.mrb[0].mxu0 %v2294
      %v2408 = vpop.f32.mrb[0].mxu0
      %v2409 = vadd.f32 0.0, %v2408
      %v2410 = vpop.f32.mrb[0].mxu0
      %v2411 = vpop.f32.mrb[0].mxu0
      %v2412 = vadd.f32 0.0, %v2411
      %v2413 = vpop.f32.mrb[0].mxu0
      %2414 = vmatprep.mubr.bf16.mxu0 0
      %2415 = vmatmul.mubr.bf16.gmra.mrb[0].mxu0 %v2297
      %v2416 = vpop.f32.mrb[0].mxu0
      %v2417 = vadd.f32 0.0, %v2416
      %v2418 = vpop.f32.mrb[0].mxu0
      %v2419 = vpop.f32.mrb[0].mxu0
      %v2420 = vadd.f32 0.0, %v2419
      %v2421 = vpop.f32.mrb[0].mxu0
      %2422 = vmatprep.mubr.bf16.mxu0 0
      %2423 = vmatmul.mubr.bf16.gmra.mrb[0].mxu0 %v2300
      %v2424 = vpop.f32.mrb[0].mxu0
      %v2425 = vadd.f32 0.0, %v2424
      %v2426 = vpop.f32.mrb[0].mxu0
      %v2427 = vpop.f32.mrb[0].mxu0
      %v2428 = vadd.f32 0.0, %v2427
      %v2429 = vpop.f32.mrb[0].mxu0
      %2430 = vmatprep.mubr.bf16.mxu0 0
      %2431 = vmatmul.mubr.bf16.gmra.mrb[0].mxu0 %v2303
      %v2432 = vpop.f32.mrb[0].mxu0
      %v2433 = vadd.f32 0.0, %v2432
      %v2434 = vpop.f32.mrb[0].mxu0
      %v2435 = vpop.f32.mrb[0].mxu0
      %v2436 = vadd.f32 0.0, %v2435
      %v2437 = vpop.f32.mrb[0].mxu0
      %2438 = vmatprep.mubr.bf16.mxu0 0
      %2439 = vmatmul.mubr.bf16.gmra.mrb[0].mxu0 %v2306
      %v2440 = vpop.f32.mrb[0].mxu0
      %v2441 = vadd.f32 0.0, %v2440
      %v2442 = vpop.f32.mrb[0].mxu0
      %v2443 = vpop.f32.mrb[0].mxu0
      %v2444 = vadd.f32 0.0, %v2443
      %v2445 = vpop.f32.mrb[0].mxu0
      %2446 = vmatprep.mubr.bf16.mxu0 0
      %2447 = vmatmul.mubr.bf16.gmra.mrb[0].mxu0 %v2309
      %v2448 = vpop.f32.mrb[0].mxu0
      %v2449 = vadd.f32 0.0, %v2448
      %v2450 = vpop.f32.mrb[0].mxu0
      %v2451 = vpop.f32.mrb[0].mxu0
      %v2452 = vadd.f32 0.0, %v2451
      %v2453 = vpop.f32.mrb[0].mxu0
      %2454 = vmatprep.mubr.bf16.mxu0 0
      %2455 = vmatmul.mubr.bf16.gmra.mrb[0].mxu0 %v2312
      %v2456 = vpop.f32.mrb[0].mxu0
      %v2457 = vadd.f32 0.0, %v2456
      %v2458 = vpop.f32.mrb[0].mxu0
      %v2459 = vpop.f32.mrb[0].mxu0
      %v2460 = vadd.f32 0.0, %v2459
      %v2461 = vpop.f32.mrb[0].mxu0
      %2462 = vmatprep.mubr.bf16.mxu0 0
      %2463 = vmatmul.mubr.bf16.gmra.mrb[0].mxu0 %v2315
      %v2464 = vpop.f32.mrb[0].mxu0
      %v2465 = vadd.f32 0.0, %v2464
      %v2466 = vpop.f32.mrb[0].mxu0
      %v2467 = vpop.f32.mrb[0].mxu0
      %v2468 = vadd.f32 0.0, %v2467
      %v2469 = vpop.f32.mrb[0].mxu0
      %2470 = vmatprep.mubr.bf16.mxu0 0
      %2471 = vmatmul.mubr.bf16.gmra.mrb[0].mxu0 %v2318
      %v2472 = vpop.f32.mrb[0].mxu0
      %v2473 = vadd.f32 0.0, %v2472
      %v2474 = vpop.f32.mrb[0].mxu0
      %v2475 = vpop.f32.mrb[0].mxu0
      %v2476 = vadd.f32 0.0, %v2475
      %v2477 = vpop.f32.mrb[0].mxu0
      %2478 = vmatprep.mubr.bf16.mxu0 0
      %2479 = vmatmul.mubr.bf16.gmra.mrb[0].mxu0 %v2321
      %v2480 = vpop.f32.mrb[0].mxu0
      %v2481 = vadd.f32 0.0, %v2480
      %v2482 = vpop.f32.mrb[0].mxu0
      %v2483 = vpop.f32.mrb[0].mxu0
      %v2484 = vadd.f32 0.0, %v2483
      %v2485 = vpop.f32.mrb[0].mxu0
      %2486 = vdwg.mxu0
      %v2487 = vadd.f32 %v1612, %v2361
      %v2488 = vadd.f32 %v1615, %v2364
      %v2489 = vadd.f32 %v1620, %v2369
      %v2490 = vadd.f32 %v1623, %v2372
      %v2491 = vadd.f32 %v1628, %v2377
      %v2492 = vadd.f32 %v1631, %v2380
      %v2493 = vadd.f32 %v1636, %v2385
      %v2494 = vadd.f32 %v1639, %v2388
      %v2495 = vadd.f32 %v1644, %v2393
      %v2496 = vadd.f32 %v1647, %v2396
      %v2497 = vadd.f32 %v1652, %v2401
      %v2498 = vadd.f32 %v1655, %v2404
      %v2499 = vadd.f32 %v1660, %v2409
      %v2500 = vadd.f32 %v1663, %v2412
      %v2501 = vadd.f32 %v1668, %v2417
      %v2502 = vadd.f32 %v1671, %v2420
      %v2503 = vadd.f32 %v1676, %v2425
      %v2504 = vadd.f32 %v1679, %v2428
      %v2505 = vadd.f32 %v1684, %v2433
      %v2506 = vadd.f32 %v1687, %v2436
      %v2507 = vadd.f32 %v1692, %v2441
      %v2508 = vadd.f32 %v1695, %v2444
      %v2509 = vadd.f32 %v1700, %v2449
      %v2510 = vadd.f32 %v1703, %v2452
      %v2511 = vadd.f32 %v1708, %v2457
      %v2512 = vadd.f32 %v1711, %v2460
      %v2513 = vadd.f32 %v1716, %v2465
      %v2514 = vadd.f32 %v1719, %v2468
      %v2515 = vadd.f32 %v1724, %v2473
      %v2516 = vadd.f32 %v1727, %v2476
      %v2517 = vadd.f32 %v1732, %v2481
      %v2518 = vadd.f32 %v1735, %v2484
      %v2519 = vld [vmem:[%s2] sm:$0x1]
      %v2521 = vlaneseq
      %v2522 = vshrl.u32 %v2521, 7
      %v2523 = vsub.s32 0, %v2522
      %v2524 = vrot.slane %v2519, %v2523
      %v2526 = vadd.f32 %v2487, %v2524
      %v2527 = vadd.f32 %v2488, %v2524
      %v2528 = vadd.f32 %v2489, %v2524
      %v2529 = vadd.f32 %v2490, %v2524
      %v2530 = vadd.f32 %v2491, %v2524
      %v2531 = vadd.f32 %v2492, %v2524
      %v2532 = vadd.f32 %v2493, %v2524
      %v2533 = vadd.f32 %v2494, %v2524
      %v2534 = vadd.f32 %v2495, %v2524
      %v2535 = vadd.f32 %v2496, %v2524
      %v2536 = vadd.f32 %v2497, %v2524
      %v2537 = vadd.f32 %v2498, %v2524
      %v2538 = vadd.f32 %v2499, %v2524
      %v2539 = vadd.f32 %v2500, %v2524
      %v2540 = vadd.f32 %v2501, %v2524
      %v2541 = vadd.f32 %v2502, %v2524
      %v2542 = vadd.f32 %v2503, %v2524
      %v2543 = vadd.f32 %v2504, %v2524
      %v2544 = vadd.f32 %v2505, %v2524
      %v2545 = vadd.f32 %v2506, %v2524
      %v2546 = vadd.f32 %v2507, %v2524
      %v2547 = vadd.f32 %v2508, %v2524
      %v2548 = vadd.f32 %v2509, %v2524
      %v2549 = vadd.f32 %v2510, %v2524
      %v2550 = vadd.f32 %v2511, %v2524
      %v2551 = vadd.f32 %v2512, %v2524
      %v2552 = vadd.f32 %v2513, %v2524
      %v2553 = vadd.f32 %v2514, %v2524
      %v2554 = vadd.f32 %v2515, %v2524
      %v2555 = vadd.f32 %v2516, %v2524
      %v2556 = vadd.f32 %v2517, %v2524
      %v2557 = vadd.f32 %v2518, %v2524
      %s2558 = sld [smem:[#allocation2]]
      %vm2559 = vcmp.ge.f32.partialorder %v2526, 0.0
      %vm2560 = vcmp.ge.f32.partialorder %v2527, 0.0
      %vm2561 = vcmp.ge.f32.partialorder %v2528, 0.0
      %vm2562 = vcmp.ge.f32.partialorder %v2529, 0.0
      %vm2563 = vcmp.ge.f32.partialorder %v2530, 0.0
      %vm2564 = vcmp.ge.f32.partialorder %v2531, 0.0
      %vm2565 = vcmp.ge.f32.partialorder %v2532, 0.0
      %vm2566 = vcmp.ge.f32.partialorder %v2533, 0.0
      %vm2567 = vcmp.ge.f32.partialorder %v2534, 0.0
      %vm2568 = vcmp.ge.f32.partialorder %v2535, 0.0
      %vm2569 = vcmp.ge.f32.partialorder %v2536, 0.0
      %vm2570 = vcmp.ge.f32.partialorder %v2537, 0.0
      %vm2571 = vcmp.ge.f32.partialorder %v2538, 0.0
      %vm2572 = vcmp.ge.f32.partialorder %v2539, 0.0
      %vm2573 = vcmp.ge.f32.partialorder %v2540, 0.0
      %vm2574 = vcmp.ge.f32.partialorder %v2541, 0.0
      %vm2575 = vcmp.ge.f32.partialorder %v2542, 0.0
      %vm2576 = vcmp.ge.f32.partialorder %v2543, 0.0
      %vm2577 = vcmp.ge.f32.partialorder %v2544, 0.0
      %vm2578 = vcmp.ge.f32.partialorder %v2545, 0.0
      %vm2579 = vcmp.ge.f32.partialorder %v2546, 0.0
      %vm2580 = vcmp.ge.f32.partialorder %v2547, 0.0
      %vm2581 = vcmp.ge.f32.partialorder %v2548, 0.0
      %vm2582 = vcmp.ge.f32.partialorder %v2549, 0.0
      %vm2583 = vcmp.ge.f32.partialorder %v2550, 0.0
      %vm2584 = vcmp.ge.f32.partialorder %v2551, 0.0
      %vm2585 = vcmp.ge.f32.partialorder %v2552, 0.0
      %vm2586 = vcmp.ge.f32.partialorder %v2553, 0.0
      %vm2587 = vcmp.ge.f32.partialorder %v2554, 0.0
      %vm2588 = vcmp.ge.f32.partialorder %v2555, 0.0
      %vm2589 = vcmp.ge.f32.partialorder %v2556, 0.0
      %vm2590 = vcmp.ge.f32.partialorder %v2557, 0.0
      %v2591 = vstv %s2558
      %v2592 = vmul.f32 %v2591, %v2526
      %v2593 = vmul.f32 %v2591, %v2527
      %v2594 = vmul.f32 %v2591, %v2528
      %v2595 = vmul.f32 %v2591, %v2529
      %v2596 = vmul.f32 %v2591, %v2530
      %v2597 = vmul.f32 %v2591, %v2531
      %v2598 = vmul.f32 %v2591, %v2532
      %v2599 = vmul.f32 %v2591, %v2533
      %v2600 = vmul.f32 %v2591, %v2534
      %v2601 = vmul.f32 %v2591, %v2535
      %v2602 = vmul.f32 %v2591, %v2536
      %v2603 = vmul.f32 %v2591, %v2537
      %v2604 = vmul.f32 %v2591, %v2538
      %v2605 = vmul.f32 %v2591, %v2539
      %v2606 = vmul.f32 %v2591, %v2540
      %v2607 = vmul.f32 %v2591, %v2541
      %v2608 = vmul.f32 %v2591, %v2542
      %v2609 = vmul.f32 %v2591, %v2543
      %v2610 = vmul.f32 %v2591, %v2544
      %v2611 = vmul.f32 %v2591, %v2545
      %v2612 = vmul.f32 %v2591, %v2546
      %v2613 = vmul.f32 %v2591, %v2547
      %v2614 = vmul.f32 %v2591, %v2548
      %v2615 = vmul.f32 %v2591, %v2549
      %v2616 = vmul.f32 %v2591, %v2550
      %v2617 = vmul.f32 %v2591, %v2551
      %v2618 = vmul.f32 %v2591, %v2552
      %v2619 = vmul.f32 %v2591, %v2553
      %v2620 = vmul.f32 %v2591, %v2554
      %v2621 = vmul.f32 %v2591, %v2555
      %v2622 = vmul.f32 %v2591, %v2556
      %v2623 = vmul.f32 %v2591, %v2557
      %v2624 = vsel %vm2559, %v2526, %v2592
      %v2625 = vsel %vm2560, %v2527, %v2593
      %v2626 = vsel %vm2561, %v2528, %v2594
      %v2627 = vsel %vm2562, %v2529, %v2595
      %v2628 = vsel %vm2563, %v2530, %v2596
      %v2629 = vsel %vm2564, %v2531, %v2597
      %v2630 = vsel %vm2565, %v2532, %v2598
      %v2631 = vsel %vm2566, %v2533, %v2599
      %v2632 = vsel %vm2567, %v2534, %v2600
      %v2633 = vsel %vm2568, %v2535, %v2601
      %v2634 = vsel %vm2569, %v2536, %v2602
      %v2635 = vsel %vm2570, %v2537, %v2603
      %v2636 = vsel %vm2571, %v2538, %v2604
      %v2637 = vsel %vm2572, %v2539, %v2605
      %v2638 = vsel %vm2573, %v2540, %v2606
      %v2639 = vsel %vm2574, %v2541, %v2607
      %v2640 = vsel %vm2575, %v2542, %v2608
      %v2641 = vsel %vm2576, %v2543, %v2609
      %v2642 = vsel %vm2577, %v2544, %v2610
      %v2643 = vsel %vm2578, %v2545, %v2611
      %v2644 = vsel %vm2579, %v2546, %v2612
      %v2645 = vsel %vm2580, %v2547, %v2613
      %v2646 = vsel %vm2581, %v2548, %v2614
      %v2647 = vsel %vm2582, %v2549, %v2615
      %v2648 = vsel %vm2583, %v2550, %v2616
      %v2649 = vsel %vm2584, %v2551, %v2617
      %v2650 = vsel %vm2585, %v2552, %v2618
      %v2651 = vsel %vm2586, %v2553, %v2619
      %v2652 = vsel %vm2587, %v2554, %v2620
      %v2653 = vsel %vm2588, %v2555, %v2621
      %v2654 = vsel %vm2589, %v2556, %v2622
      %v2655 = vsel %vm2590, %v2557, %v2623
      %vm2656 = vcmask 130048
      %2657 = vst.msk [vmem:[%s234] sm:$0xff] %vm2656, %v2624
      %2658 = vst.msk [vmem:[%s234 + $0x8] sm:$0xff] %vm2656, %v2625
      %2659 = vst.msk [vmem:[%s234 + $0x10] sm:$0xff] %vm2656, %v2626
      %2660 = vst.msk [vmem:[%s234 + $0x18] sm:$0xff] %vm2656, %v2627
      %2661 = vst.msk [vmem:[%s234 + $0x20] sm:$0xff] %vm2656, %v2628
      %2662 = vst.msk [vmem:[%s234 + $0x28] sm:$0xff] %vm2656, %v2629
      %2663 = vst.msk [vmem:[%s234 + $0x30] sm:$0xff] %vm2656, %v2630
      %2664 = vst.msk [vmem:[%s234 + $0x38] sm:$0xff] %vm2656, %v2631
      %2665 = vst.msk [vmem:[%s234 + $0x40] sm:$0xff] %vm2656, %v2632
      %2666 = vst.msk [vmem:[%s234 + $0x48] sm:$0xff] %vm2656, %v2633
      %2667 = vst.msk [vmem:[%s234 + $0x50] sm:$0xff] %vm2656, %v2634
      %2668 = vst.msk [vmem:[%s234 + $0x58] sm:$0xff] %vm2656, %v2635
      %2669 = vst.msk [vmem:[%s234 + $0x60] sm:$0xff] %vm2656, %v2636
      %2670 = vst.msk [vmem:[%s234 + $0x68] sm:$0xff] %vm2656, %v2637
      %2671 = vst.msk [vmem:[%s234 + $0x70] sm:$0xff] %vm2656, %v2638
      %2672 = vst.msk [vmem:[%s234 + $0x78] sm:$0xff] %vm2656, %v2639
      %2673 = vst.msk [vmem:[%s234 + $0x80] sm:$0xff] %vm2656, %v2640
      %2674 = vst.msk [vmem:[%s234 + $0x88] sm:$0xff] %vm2656, %v2641
      %2675 = vst.msk [vmem:[%s234 + $0x90] sm:$0xff] %vm2656, %v2642
      %2676 = vst.msk [vmem:[%s234 + $0x98] sm:$0xff] %vm2656, %v2643
      %2677 = vst.msk [vmem:[%s234 + $0xa0] sm:$0xff] %vm2656, %v2644
      %2678 = vst.msk [vmem:[%s234 + $0xa8] sm:$0xff] %vm2656, %v2645
      %2679 = vst.msk [vmem:[%s234 + $0xb0] sm:$0xff] %vm2656, %v2646
      %2680 = vst.msk [vmem:[%s234 + $0xb8] sm:$0xff] %vm2656, %v2647
      %2681 = vst.msk [vmem:[%s234 + $0xc0] sm:$0xff] %vm2656, %v2648
      %2682 = vst.msk [vmem:[%s234 + $0xc8] sm:$0xff] %vm2656, %v2649
      %2683 = vst.msk [vmem:[%s234 + $0xd0] sm:$0xff] %vm2656, %v2650
      %2684 = vst.msk [vmem:[%s234 + $0xd8] sm:$0xff] %vm2656, %v2651
      %2685 = vst.msk [vmem:[%s234 + $0xe0] sm:$0xff] %vm2656, %v2652
      %2686 = vst.msk [vmem:[%s234 + $0xe8] sm:$0xff] %vm2656, %v2653
      %2687 = vst.msk [vmem:[%s234 + $0xf0] sm:$0xff] %vm2656, %v2654
      %2688 = vst.msk [vmem:[%s234 + $0xf8] sm:$0xff] %vm2656, %v2655
      %s2689 = smul.u32 32, %s21
      %p2690 = scmp.lt.s32.totalorder %s20, 1
      %s2691 = scalar_select %p2690, %s20, 1
      %p2692 = scmp.lt.s32.totalorder %s2689, 31
      %s2693 = scalar_select %p2692, %s2689, 31
      %s2694 = smul.addr %s2691, 32
      %s2695 = sadd.s32 %s2693, %s2694
      %s2696 = smul.addr %s2695, 8
      %s2697 = scalar_lea.vmem %s4, %s2696
      // Predicated region
      $region37: #{_forward_impl.1} parent=35 // pred_check
        %p2698 = pneg %p139
      $region38: #{_forward_impl.1} parent=35 // pred_check_branch
        %2700 = sbr.rel (%p2698) target = $region40
      $region39: #{_forward_impl.1} parent=35 // pred_region
        %s2701 = smul.u32 32, %s21
      $region40: #{_forward_impl.1} parent=35 // pred_fallthru
        _
    $region36: #{_forward_impl.1} parent=5 // pred_fallthru
      _
    %p2702 = scmp.le.s32.totalorder 2, %s11
    // Predicated region
    $region41: #{_forward_impl.1} parent=5 // pred_check
      %p2703 = pneg %p2702
    $region42: #{_forward_impl.1} parent=5 // pred_check_branch
      %2705 = sbr.rel (%p2703) target = $region44
    $region43: #{_forward_impl.1} parent=5 // pred_region
      %s2706 = ssub.s32 %s11, 2
      // Predicated region
      $region45: #{_forward_impl.1} parent=43 // pred_check
        %p2707 = pneg %p145
      $region46: #{_forward_impl.1} parent=43 // pred_check_branch
        %2709 = sbr.rel (%p2707) target = $region48
      $region47: #{_forward_impl.1} parent=43 // pred_region
        %s2710 = smul.u32 32, %s23
        %p2711 = scmp.lt.s32.totalorder %s22, 1
        %s2712 = scalar_select %p2711, %s22, 1
        %p2713 = scmp.lt.s32.totalorder %s2710, 31
        %s2714 = scalar_select %p2713, %s2710, 31
        %s2715 = smul.addr %s2712, 32
        %s2716 = sadd.s32 %s2714, %s2715
        %s2717 = smul.addr %s2716, 8
        %s2718 = scalar_lea.vmem %s4, %s2717
      $region48: #{_forward_impl.1} parent=43 // pred_fallthru
        _
    $region44: #{_forward_impl.1} parent=5 // pred_fallthru
      _
  $region6: #{_forward_impl.1} parent=0 // loop_footer
    %s15 = sadd.s32 1, %s11
  $region7: #{_forward_impl.1} parent=0 // loop_footer_branch
    %10 = sbr.rel target = $region3
  $region8: #{_forward_impl.1} parent=0 // loop_exit
    _

</llo_original>
